<compile_context>
chip_gen: v6e
topology: v6e:2x2x1
jax: 0.10.0
libtpu: 0.0.40
codegen_flags: <defaults>
</compile_context>

<pallas_src>
import numpy as np
import jax
import jax.numpy as jnp
from jax.experimental import pallas as pl
from jax.experimental.pallas import tpu as pltpu

# ----------------------- synthetic "options" -----------------------
FILTERS = [(1, 32), (2, 32), (3, 64)]     # (width, num)
N_FILTERS = sum(n for _, n in FILTERS)    # 128
N_HIGHWAY = 2
OUTPUT_DIM = 32                           # lstm.projection_dim
MAX_CHARS = 8                             # max_characters_per_token
CHAR_EMB_DIM = 16
N_CHARS = 262                             # ELMo char vocab (+1 padding row -> 263)
TOKEN_TILE = 1024                         # tokens per grid step (multiple of 32)
PACK = 4                                  # tokens packed per lane-dense output row
assert PACK * OUTPUT_DIM == 128
assert MAX_CHARS * CHAR_EMB_DIM == 128


def _round_up(x, m):
    return ((x + m - 1) // m) * m


# ----------------------- Pallas kernel -----------------------
def _char_encoder_kernel(x_ref, w_slots_ref, cbias_ref, hw_w_ref, hw_b_ref,
                         proj4_ref, pbias4_ref, out_ref):
    """x_ref: (TILE, T*C) bf16 -> out_ref: (TILE//PACK, PACK*OUTPUT_DIM) f32."""
    x = x_ref[...]                                      # (TILE, 128) bf16
    tile = x.shape[0]
    d = cbias_ref.shape[1]                              # 128 = n_filters
    q = tile // PACK

    # --- char CNN: 8 time-slot matmuls, max-over-time accumulated lane-dense ---
    pooled = jnp.dot(x, w_slots_ref[0], preferred_element_type=jnp.float32)
    for s in range(1, w_slots_ref.shape[0]):            # static unroll: MXU pushes
        pooled = jnp.maximum(
            pooled, jnp.dot(x, w_slots_ref[s], preferred_element_type=jnp.float32))
    cur = jax.nn.relu(pooled + cbias_ref[...])          # (TILE, 128) f32  (relu act.)

    # --- highway layers: bf16 MXU operands, f32 element-wise, sigmoid on EUP ---
    for k in range(hw_w_ref.shape[0]):
        proj = jnp.dot(cur.astype(jnp.bfloat16), hw_w_ref[k],
                       preferred_element_type=jnp.float32) + hw_b_ref[k]   # (TILE, 256)
        nonlin = jax.nn.relu(proj[:, :d])
        gate = jax.nn.sigmoid(proj[:, d:])
        cur = gate * cur + (1.0 - gate) * nonlin

    # --- projection of PACK tokens per row via block-diagonal weights ---
    # cur4[m, 128*j + u] = cur[j*q + m, u]  (aligned row-chunk slices + lane concat)
    cur4 = jnp.concatenate([cur[j * q:(j + 1) * q, :] for j in range(PACK)],
                           axis=1).astype(jnp.bfloat16)                    # (q, 512)
    out = jnp.dot(cur4, proj4_ref[...],
                  preferred_element_type=jnp.float32) + pbias4_ref[...]    # (q, 128)
    out_ref[...] = out.astype(out_ref.dtype)


def char_encoder_pallas(x, packed):
    """x: (N, T*C) bf16 -> (N, OUTPUT_DIM) f32 via one tiled Pallas call."""
    n, tc = x.shape
    d = N_FILTERS
    tile = min(TOKEN_TILE, _round_up(n, 32))            # big tile, clamped for tiny N
    n_pad = _round_up(n, tile)
    if n_pad != n:
        x = jnp.concatenate([x, jnp.zeros((n_pad - n, tc), x.dtype)], axis=0)

    out = pl.pallas_call(
        _char_encoder_kernel,
        out_shape=jax.ShapeDtypeStruct((n_pad // PACK, PACK * OUTPUT_DIM), jnp.float32),
        grid=(n_pad // tile,),
        in_specs=[
            pl.BlockSpec((tile, tc), lambda i: (i, 0)),
            pl.BlockSpec((MAX_CHARS, tc, d), lambda i: (0, 0, 0)),      # resident
            pl.BlockSpec((1, d), lambda i: (0, 0)),
            pl.BlockSpec((N_HIGHWAY, d, 2 * d), lambda i: (0, 0, 0)),
            pl.BlockSpec((N_HIGHWAY, 1, 2 * d), lambda i: (0, 0, 0)),
            pl.BlockSpec((PACK * d, PACK * OUTPUT_DIM), lambda i: (0, 0)),
            pl.BlockSpec((1, PACK * OUTPUT_DIM), lambda i: (0, 0)),
        ],
        out_specs=pl.BlockSpec((tile // PACK, PACK * OUTPUT_DIM), lambda i: (i, 0)),
        compiler_params=pltpu.CompilerParams(dimension_semantics=("parallel",)),
    )(x, packed["w_slots"], packed["conv_bias"], packed["hw_w"], packed["hw_b"],
      packed["proj4"], packed["proj_b4"])

    # un-pack: within grid block i, row m / lane-group j holds token i*tile + j*q + m
    q = tile // PACK
    out = out.reshape(n_pad // tile, q, PACK, OUTPUT_DIM).transpose(0, 2, 1, 3)
    return out.reshape(n_pad, OUTPUT_DIM)[:n]


# ----------------------- plain-JAX glue -----------------------
def add_sentence_boundary_token_ids(tensor, mask, bos_chars, eos_chars):
    """tensor: (B, S, T) int32, mask: (B, S) bool -> (B, S+2, T), (B, S+2)."""
    b, s, t = tensor.shape
    seq_lens = mask.astype(jnp.int32).sum(axis=1)
    out = jnp.zeros((b, s + 2, t), dtype=tensor.dtype)
    out = out.at[:, 1:s + 1, :].set(tensor)
    out = out.at[:, 0, :].set(bos_chars[None, :])
    out = out.at[jnp.arange(b), seq_lens + 1, :].set(eos_chars[None, :])
    new_mask = (out > 0).sum(axis=-1) > 0
    return out, new_mask


def elmo_character_encoder_forward(inputs, params, packed):
    """inputs: (B, S, T) int32 char ids.  Returns dict(mask, token_embedding)."""
    mask = (inputs > 0).sum(axis=-1) > 0
    ids_be, mask_be = add_sentence_boundary_token_ids(
        inputs, mask, params["bos_chars"], params["eos_chars"])
    b, s2, t = ids_be.shape

    # embedding gather (XLA glue), emitted lane-dense (N, T*C) and in bf16
    char_emb = jnp.take(packed["char_embedding"], ids_be.reshape(-1, t), axis=0)
    x = char_emb.reshape(-1, t * CHAR_EMB_DIM)                    # (N, 128) bf16

    token_emb = char_encoder_pallas(x, packed)                    # (N, OUTPUT_DIM) f32
    return {"mask": mask_be,
            "token_embedding": token_emb.reshape(b, s2, OUTPUT_DIM)}


# ----------------------- params -----------------------
def make_params(key):
    keys = jax.random.split(key, 16)
    ki = iter(keys)
    emb = 0.1 * jax.random.normal(next(ki), (N_CHARS + 1, CHAR_EMB_DIM), jnp.float32)
    emb = emb.at[0].set(0.0)                                      # padding row = 0
    convs = []
    for (w, o) in FILTERS:
        cw = 0.1 * jax.random.normal(next(ki), (w, CHAR_EMB_DIM, o), jnp.float32)
        cb = 0.1 * jax.random.normal(next(ki), (1, o), jnp.float32)
        convs.append((cw, cb))
    d = N_FILTERS
    hw_w = 0.05 * jax.random.normal(next(ki), (N_HIGHWAY, d, 2 * d), jnp.float32)
    hw_b = 0.05 * jax.random.normal(next(ki), (N_HIGHWAY, 1, 2 * d), jnp.float32)
    proj_w = 0.05 * jax.random.normal(next(ki), (d, OUTPUT_DIM), jnp.float32)
    proj_b = 0.05 * jax.random.normal(next(ki), (1, OUTPUT_DIM), jnp.float32)
    bos = jnp.array([259, 257, 260] + [261] * (MAX_CHARS - 3), jnp.int32)
    eos = jnp.array([259, 258, 260] + [261] * (MAX_CHARS - 3), jnp.int32)
    return {"char_embedding": emb, "convs": convs, "hw_w": hw_w, "hw_b": hw_b,
            "proj_w": proj_w, "proj_b": proj_b, "bos_chars": bos, "eos_chars": eos}


def pack_params(params):
    """Pre-expand weights into the MXU / lane-dense layouts the kernel consumes."""
    d = N_FILTERS
    # Per-time-slot block-Toeplitz conv weights.  Slot s computes every filter at time
    # position min(s, t_out_f - 1): slots past a filter's range duplicate the last
    # valid position, leaving max-over-time unchanged.
    W = np.zeros((MAX_CHARS, MAX_CHARS * CHAR_EMB_DIM, d), np.float32)
    b = np.zeros((1, d), np.float32)
    off = 0
    for (w, o), (cw, cb) in zip(FILTERS, params["convs"]):
        cw = np.asarray(cw)
        cb = np.asarray(cb).reshape(-1)
        t_out = MAX_CHARS - w + 1
        for s in range(MAX_CHARS):
            p = min(s, t_out - 1)
            for k in range(w):
                r0 = (p + k) * CHAR_EMB_DIM
                W[s, r0:r0 + CHAR_EMB_DIM, off:off + o] = cw[k]
        b[0, off:off + o] = cb
        off += o
    # Block-diagonal projection over PACK tokens -> lane-dense (q, 128) output rows.
    pw = np.asarray(params["proj_w"])
    pb = np.asarray(params["proj_b"]).reshape(-1)
    P4 = np.zeros((PACK * d, PACK * OUTPUT_DIM), np.float32)
    for j in range(PACK):
        P4[j * d:(j + 1) * d, j * OUTPUT_DIM:(j + 1) * OUTPUT_DIM] = pw
    b4 = np.tile(pb[None, :], (1, PACK))
    return {
        "char_embedding": params["char_embedding"].astype(jnp.bfloat16),
        "w_slots": jnp.asarray(W, jnp.bfloat16),
        "conv_bias": jnp.asarray(b, jnp.float32),
        "hw_w": params["hw_w"].astype(jnp.bfloat16),
        "hw_b": params["hw_b"].astype(jnp.float32),
        "proj4": jnp.asarray(P4, jnp.bfloat16),
        "proj_b4": jnp.asarray(b4, jnp.float32),
    }


# ----------------------- pure-JAX f32 reference (for a sanity check) -----------------
def reference_forward(char_emb, params):
    """Mirrors the PyTorch per-filter conv -> max -> relu -> highway -> projection."""
    n = char_emb.shape[0]
    feats = []
    for (w, o), (cw, cb) in zip(FILTERS, params["convs"]):
        t_out = MAX_CHARS - w + 1
        acc = jnp.zeros((n, t_out, o), jnp.float32)
        for k in range(w):
            acc = acc + jnp.einsum("ntc,co->nto", char_emb[:, k:k + t_out, :], cw[k])
        feats.append(jax.nn.relu(jnp.max(acc, axis=1) + cb))
    cur = jnp.concatenate(feats, axis=-1)
    for hk in range(N_HIGHWAY):
        proj = cur @ params["hw_w"][hk] + params["hw_b"][hk]
        nonlin = jax.nn.relu(proj[:, :N_FILTERS])
        gate = jax.nn.sigmoid(proj[:, N_FILTERS:])
        cur = gate * cur + (1.0 - gate) * nonlin
    return cur @ params["proj_w"] + params["proj_b"]


if __name__ == "__main__":
    key = jax.random.PRNGKey(0)
    pkey, ikey = jax.random.split(key)
    params = make_params(pkey)
    packed = pack_params(params)

    # small input: batch=2, seq=6 (-> 8 tokens with BOS/EOS), max_chars=8
    B, S = 2, 6
    char_ids = jax.random.randint(ikey, (B, S, MAX_CHARS), 1, N_CHARS + 1, jnp.int32)
    lengths = jnp.array([6, 4], jnp.int32)
    tok_mask = jnp.arange(S)[None, :] < lengths[:, None]          # (B, S)
    char_ids = jnp.where(tok_mask[:, :, None], char_ids, 0)       # pad tokens -> 0

    fwd = jax.jit(elmo_character_encoder_forward)
    out = fwd(char_ids, params, packed)
    tok = jax.block_until_ready(out["token_embedding"])
    msk = jax.block_until_ready(out["mask"])
    assert tok.shape == (B, S + 2, OUTPUT_DIM)
    assert msk.shape == (B, S + 2)

    # sanity check vs plain-JAX f32 reference (kernel uses bf16 MXU operands)
    mask = (char_ids > 0).sum(axis=-1) > 0
    ids_be, _ = add_sentence_boundary_token_ids(char_ids, mask,
                                                params["bos_chars"], params["eos_chars"])
    emb_f32 = jnp.take(params["char_embedding"], ids_be.reshape(-1, MAX_CHARS), axis=0)
    ref = reference_forward(emb_f32, params)
    err = float(jnp.max(jnp.abs(tok.reshape(-1, OUTPUT_DIM) - ref)))
    assert err < 5e-2, f"kernel vs reference max abs err = {err}"
    print("KERNEL_OK")
</pallas_src>

<mosaic_0001>
module attributes {stable_mosaic.version = 11 : i64} {
  func.func @_char_encoder_kernel(%arg0: i32, %arg1: memref<32x128xbf16, #tpu.memory_space<vmem>>, %arg2: memref<8x128x128xbf16, #tpu.memory_space<vmem>>, %arg3: memref<1x128xf32, #tpu.memory_space<vmem>>, %arg4: memref<2x128x256xbf16, #tpu.memory_space<vmem>>, %arg5: memref<2x1x256xf32, #tpu.memory_space<vmem>>, %arg6: memref<512x128xbf16, #tpu.memory_space<vmem>>, %arg7: memref<1x128xf32, #tpu.memory_space<vmem>>, %arg8: memref<8x128xf32, #tpu.memory_space<vmem>>) attributes {dimension_semantics = [#tpu.dimension_semantics<parallel>], iteration_bounds = array<i64: 1>, scalar_prefetch = 0 : i64, scratch_operands = 0 : i64, tpu.core_type = #tpu.core_type<tc>, window_params = [{transform_indices = @transform_0, window_bounds = array<i64: 32, 128>}, {pipeline_mode = #tpu.pipeline_mode<synchronous>, transform_indices = @transform_1, window_bounds = array<i64: 8, 128, 128>}, {pipeline_mode = #tpu.pipeline_mode<synchronous>, transform_indices = @transform_2, window_bounds = array<i64: 1, 128>}, {pipeline_mode = #tpu.pipeline_mode<synchronous>, transform_indices = @transform_3, window_bounds = array<i64: 2, 128, 256>}, {pipeline_mode = #tpu.pipeline_mode<synchronous>, transform_indices = @transform_4, window_bounds = array<i64: 2, 1, 256>}, {pipeline_mode = #tpu.pipeline_mode<synchronous>, transform_indices = @transform_5, window_bounds = array<i64: 512, 128>}, {pipeline_mode = #tpu.pipeline_mode<synchronous>, transform_indices = @transform_6, window_bounds = array<i64: 1, 128>}, {transform_indices = @transform_7, window_bounds = array<i64: 8, 128>}]} {
    %c0 = arith.constant 0 : index
    %c0_0 = arith.constant 0 : index
    %0 = vector.load %arg1[%c0, %c0_0] : memref<32x128xbf16, #tpu.memory_space<vmem>>, vector<32x128xbf16>
    %c0_1 = arith.constant 0 : index
    %c0_2 = arith.constant 0 : index
    %c0_3 = arith.constant 0 : index
    %1 = vector.load %arg2[%c0_1, %c0_2, %c0_3] : memref<8x128x128xbf16, #tpu.memory_space<vmem>>, vector<1x128x128xbf16>
    %2 = vector.shape_cast %1 : vector<1x128x128xbf16> to vector<128x128xbf16>
    %cst = arith.constant dense<0.000000e+00> : vector<32x128xf32>
    %3 = tpu.matmul %0, %2, %cst {dimension_numbers = #tpu.dot_dimension_numbers<[1], [0], [0], [1], [0, 0, 1, 1], [], []>} : vector<32x128xbf16>, vector<128x128xbf16>, vector<32x128xf32> -> vector<32x128xf32>
    %c1 = arith.constant 1 : index
    %c0_4 = arith.constant 0 : index
    %c0_5 = arith.constant 0 : index
    %4 = vector.load %arg2[%c1, %c0_4, %c0_5] : memref<8x128x128xbf16, #tpu.memory_space<vmem>>, vector<1x128x128xbf16>
    %5 = vector.shape_cast %4 : vector<1x128x128xbf16> to vector<128x128xbf16>
    %cst_6 = arith.constant dense<0.000000e+00> : vector<32x128xf32>
    %6 = tpu.matmul %0, %5, %cst_6 {dimension_numbers = #tpu.dot_dimension_numbers<[1], [0], [0], [1], [0, 0, 1, 1], [], []>} : vector<32x128xbf16>, vector<128x128xbf16>, vector<32x128xf32> -> vector<32x128xf32>
    %7 = arith.maximumf %3, %6 : vector<32x128xf32>
    %c2 = arith.constant 2 : index
    %c0_7 = arith.constant 0 : index
    %c0_8 = arith.constant 0 : index
    %8 = vector.load %arg2[%c2, %c0_7, %c0_8] : memref<8x128x128xbf16, #tpu.memory_space<vmem>>, vector<1x128x128xbf16>
    %9 = vector.shape_cast %8 : vector<1x128x128xbf16> to vector<128x128xbf16>
    %cst_9 = arith.constant dense<0.000000e+00> : vector<32x128xf32>
    %10 = tpu.matmul %0, %9, %cst_9 {dimension_numbers = #tpu.dot_dimension_numbers<[1], [0], [0], [1], [0, 0, 1, 1], [], []>} : vector<32x128xbf16>, vector<128x128xbf16>, vector<32x128xf32> -> vector<32x128xf32>
    %11 = arith.maximumf %7, %10 : vector<32x128xf32>
    %c3 = arith.constant 3 : index
    %c0_10 = arith.constant 0 : index
    %c0_11 = arith.constant 0 : index
    %12 = vector.load %arg2[%c3, %c0_10, %c0_11] : memref<8x128x128xbf16, #tpu.memory_space<vmem>>, vector<1x128x128xbf16>
    %13 = vector.shape_cast %12 : vector<1x128x128xbf16> to vector<128x128xbf16>
    %cst_12 = arith.constant dense<0.000000e+00> : vector<32x128xf32>
    %14 = tpu.matmul %0, %13, %cst_12 {dimension_numbers = #tpu.dot_dimension_numbers<[1], [0], [0], [1], [0, 0, 1, 1], [], []>} : vector<32x128xbf16>, vector<128x128xbf16>, vector<32x128xf32> -> vector<32x128xf32>
    %15 = arith.maximumf %11, %14 : vector<32x128xf32>
    %c4 = arith.constant 4 : index
    %c0_13 = arith.constant 0 : index
    %c0_14 = arith.constant 0 : index
    %16 = vector.load %arg2[%c4, %c0_13, %c0_14] : memref<8x128x128xbf16, #tpu.memory_space<vmem>>, vector<1x128x128xbf16>
    %17 = vector.shape_cast %16 : vector<1x128x128xbf16> to vector<128x128xbf16>
    %cst_15 = arith.constant dense<0.000000e+00> : vector<32x128xf32>
    %18 = tpu.matmul %0, %17, %cst_15 {dimension_numbers = #tpu.dot_dimension_numbers<[1], [0], [0], [1], [0, 0, 1, 1], [], []>} : vector<32x128xbf16>, vector<128x128xbf16>, vector<32x128xf32> -> vector<32x128xf32>
    %19 = arith.maximumf %15, %18 : vector<32x128xf32>
    %c5 = arith.constant 5 : index
    %c0_16 = arith.constant 0 : index
    %c0_17 = arith.constant 0 : index
    %20 = vector.load %arg2[%c5, %c0_16, %c0_17] : memref<8x128x128xbf16, #tpu.memory_space<vmem>>, vector<1x128x128xbf16>
    %21 = vector.shape_cast %20 : vector<1x128x128xbf16> to vector<128x128xbf16>
    %cst_18 = arith.constant dense<0.000000e+00> : vector<32x128xf32>
    %22 = tpu.matmul %0, %21, %cst_18 {dimension_numbers = #tpu.dot_dimension_numbers<[1], [0], [0], [1], [0, 0, 1, 1], [], []>} : vector<32x128xbf16>, vector<128x128xbf16>, vector<32x128xf32> -> vector<32x128xf32>
    %23 = arith.maximumf %19, %22 : vector<32x128xf32>
    %c6 = arith.constant 6 : index
    %c0_19 = arith.constant 0 : index
    %c0_20 = arith.constant 0 : index
    %24 = vector.load %arg2[%c6, %c0_19, %c0_20] : memref<8x128x128xbf16, #tpu.memory_space<vmem>>, vector<1x128x128xbf16>
    %25 = vector.shape_cast %24 : vector<1x128x128xbf16> to vector<128x128xbf16>
    %cst_21 = arith.constant dense<0.000000e+00> : vector<32x128xf32>
    %26 = tpu.matmul %0, %25, %cst_21 {dimension_numbers = #tpu.dot_dimension_numbers<[1], [0], [0], [1], [0, 0, 1, 1], [], []>} : vector<32x128xbf16>, vector<128x128xbf16>, vector<32x128xf32> -> vector<32x128xf32>
    %27 = arith.maximumf %23, %26 : vector<32x128xf32>
    %c7 = arith.constant 7 : index
    %c0_22 = arith.constant 0 : index
    %c0_23 = arith.constant 0 : index
    %28 = vector.load %arg2[%c7, %c0_22, %c0_23] : memref<8x128x128xbf16, #tpu.memory_space<vmem>>, vector<1x128x128xbf16>
    %29 = vector.shape_cast %28 : vector<1x128x128xbf16> to vector<128x128xbf16>
    %cst_24 = arith.constant dense<0.000000e+00> : vector<32x128xf32>
    %30 = tpu.matmul %0, %29, %cst_24 {dimension_numbers = #tpu.dot_dimension_numbers<[1], [0], [0], [1], [0, 0, 1, 1], [], []>} : vector<32x128xbf16>, vector<128x128xbf16>, vector<32x128xf32> -> vector<32x128xf32>
    %31 = arith.maximumf %27, %30 : vector<32x128xf32>
    %c0_25 = arith.constant 0 : index
    %c0_26 = arith.constant 0 : index
    %32 = vector.load %arg3[%c0_25, %c0_26] : memref<1x128xf32, #tpu.memory_space<vmem>>, vector<1x128xf32>
    %33 = vector.broadcast %32 : vector<1x128xf32> to vector<32x128xf32>
    %34 = arith.addf %31, %33 : vector<32x128xf32>
    %cst_27 = arith.constant 0.000000e+00 : f32
    %35 = vector.broadcast %cst_27 : f32 to vector<32x128xf32>
    %36 = arith.maximumf %34, %35 : vector<32x128xf32>
    %37 = arith.truncf %36 : vector<32x128xf32> to vector<32x128xbf16>
    %c0_28 = arith.constant 0 : index
    %c0_29 = arith.constant 0 : index
    %c0_30 = arith.constant 0 : index
    %38 = vector.load %arg4[%c0_28, %c0_29, %c0_30] : memref<2x128x256xbf16, #tpu.memory_space<vmem>>, vector<1x128x256xbf16>
    %39 = vector.shape_cast %38 : vector<1x128x256xbf16> to vector<128x256xbf16>
    %cst_31 = arith.constant dense<0.000000e+00> : vector<32x256xf32>
    %40 = tpu.matmul %37, %39, %cst_31 {dimension_numbers = #tpu.dot_dimension_numbers<[1], [0], [0], [1], [0, 0, 1, 1], [], []>} : vector<32x128xbf16>, vector<128x256xbf16>, vector<32x256xf32> -> vector<32x256xf32>
    %c0_32 = arith.constant 0 : index
    %c0_33 = arith.constant 0 : index
    %c0_34 = arith.constant 0 : index
    %41 = vector.load %arg5[%c0_32, %c0_33, %c0_34] : memref<2x1x256xf32, #tpu.memory_space<vmem>>, vector<1x1x256xf32>
    %42 = vector.shape_cast %41 : vector<1x1x256xf32> to vector<1x256xf32>
    %43 = vector.broadcast %42 : vector<1x256xf32> to vector<32x256xf32>
    %44 = arith.addf %40, %43 : vector<32x256xf32>
    %45 = vector.extract_strided_slice %44 {offsets = [0, 0], sizes = [32, 128], strides = [1, 1]} : vector<32x256xf32> to vector<32x128xf32>
    %cst_35 = arith.constant 0.000000e+00 : f32
    %46 = vector.broadcast %cst_35 : f32 to vector<32x128xf32>
    %47 = arith.maximumf %45, %46 : vector<32x128xf32>
    %48 = vector.extract_strided_slice %44 {offsets = [0, 128], sizes = [32, 128], strides = [1, 1]} : vector<32x256xf32> to vector<32x128xf32>
    %49 = arith.negf %48 : vector<32x128xf32>
    %50 = math.exp %49 : vector<32x128xf32>
    %cst_36 = arith.constant 1.000000e+00 : f32
    %51 = vector.broadcast %cst_36 : f32 to vector<32x128xf32>
    %52 = arith.addf %51, %50 : vector<32x128xf32>
    %53 = arith.divf %51, %52 : vector<32x128xf32>
    %54 = arith.mulf %53, %36 : vector<32x128xf32>
    %cst_37 = arith.constant 1.000000e+00 : f32
    %55 = vector.broadcast %cst_37 : f32 to vector<32x128xf32>
    %56 = arith.subf %55, %53 : vector<32x128xf32>
    %57 = arith.mulf %56, %47 : vector<32x128xf32>
    %58 = arith.addf %54, %57 : vector<32x128xf32>
    %59 = arith.truncf %58 : vector<32x128xf32> to vector<32x128xbf16>
    %c1_38 = arith.constant 1 : index
    %c0_39 = arith.constant 0 : index
    %c0_40 = arith.constant 0 : index
    %60 = vector.load %arg4[%c1_38, %c0_39, %c0_40] : memref<2x128x256xbf16, #tpu.memory_space<vmem>>, vector<1x128x256xbf16>
    %61 = vector.shape_cast %60 : vector<1x128x256xbf16> to vector<128x256xbf16>
    %cst_41 = arith.constant dense<0.000000e+00> : vector<32x256xf32>
    %62 = tpu.matmul %59, %61, %cst_41 {dimension_numbers = #tpu.dot_dimension_numbers<[1], [0], [0], [1], [0, 0, 1, 1], [], []>} : vector<32x128xbf16>, vector<128x256xbf16>, vector<32x256xf32> -> vector<32x256xf32>
    %c1_42 = arith.constant 1 : index
    %c0_43 = arith.constant 0 : index
    %c0_44 = arith.constant 0 : index
    %63 = vector.load %arg5[%c1_42, %c0_43, %c0_44] : memref<2x1x256xf32, #tpu.memory_space<vmem>>, vector<1x1x256xf32>
    %64 = vector.shape_cast %63 : vector<1x1x256xf32> to vector<1x256xf32>
    %65 = vector.broadcast %64 : vector<1x256xf32> to vector<32x256xf32>
    %66 = arith.addf %62, %65 : vector<32x256xf32>
    %67 = vector.extract_strided_slice %66 {offsets = [0, 0], sizes = [32, 128], strides = [1, 1]} : vector<32x256xf32> to vector<32x128xf32>
    %cst_45 = arith.constant 0.000000e+00 : f32
    %68 = vector.broadcast %cst_45 : f32 to vector<32x128xf32>
    %69 = arith.maximumf %67, %68 : vector<32x128xf32>
    %70 = vector.extract_strided_slice %66 {offsets = [0, 128], sizes = [32, 128], strides = [1, 1]} : vector<32x256xf32> to vector<32x128xf32>
    %71 = arith.negf %70 : vector<32x128xf32>
    %72 = math.exp %71 : vector<32x128xf32>
    %cst_46 = arith.constant 1.000000e+00 : f32
    %73 = vector.broadcast %cst_46 : f32 to vector<32x128xf32>
    %74 = arith.addf %73, %72 : vector<32x128xf32>
    %75 = arith.divf %73, %74 : vector<32x128xf32>
    %76 = arith.mulf %75, %58 : vector<32x128xf32>
    %cst_47 = arith.constant 1.000000e+00 : f32
    %77 = vector.broadcast %cst_47 : f32 to vector<32x128xf32>
    %78 = arith.subf %77, %75 : vector<32x128xf32>
    %79 = arith.mulf %78, %69 : vector<32x128xf32>
    %80 = arith.addf %76, %79 : vector<32x128xf32>
    %81 = vector.extract_strided_slice %80 {offsets = [0, 0], sizes = [8, 128], strides = [1, 1]} : vector<32x128xf32> to vector<8x128xf32>
    %82 = vector.extract_strided_slice %80 {offsets = [8, 0], sizes = [8, 128], strides = [1, 1]} : vector<32x128xf32> to vector<8x128xf32>
    %83 = vector.extract_strided_slice %80 {offsets = [16, 0], sizes = [8, 128], strides = [1, 1]} : vector<32x128xf32> to vector<8x128xf32>
    %84 = vector.extract_strided_slice %80 {offsets = [24, 0], sizes = [8, 128], strides = [1, 1]} : vector<32x128xf32> to vector<8x128xf32>
    %85 = tpu.concatenate %81, %82, %83, %84 in 1 : vector<8x128xf32>, vector<8x128xf32>, vector<8x128xf32>, vector<8x128xf32> -> vector<8x512xf32>
    %86 = arith.truncf %85 : vector<8x512xf32> to vector<8x512xbf16>
    %c0_48 = arith.constant 0 : index
    %c0_49 = arith.constant 0 : index
    %87 = vector.load %arg6[%c0_48, %c0_49] : memref<512x128xbf16, #tpu.memory_space<vmem>>, vector<512x128xbf16>
    %cst_50 = arith.constant dense<0.000000e+00> : vector<8x128xf32>
    %88 = tpu.matmul %86, %87, %cst_50 {dimension_numbers = #tpu.dot_dimension_numbers<[1], [0], [0], [1], [0, 0, 1, 1], [], []>} : vector<8x512xbf16>, vector<512x128xbf16>, vector<8x128xf32> -> vector<8x128xf32>
    %c0_51 = arith.constant 0 : index
    %c0_52 = arith.constant 0 : index
    %89 = vector.load %arg7[%c0_51, %c0_52] : memref<1x128xf32, #tpu.memory_space<vmem>>, vector<1x128xf32>
    %90 = vector.broadcast %89 : vector<1x128xf32> to vector<8x128xf32>
    %91 = arith.addf %88, %90 : vector<8x128xf32>
    %c0_53 = arith.constant 0 : index
    %c0_54 = arith.constant 0 : index
    %92 = vector.load %arg8[%c0_53, %c0_54] : memref<8x128xf32, #tpu.memory_space<vmem>>, vector<8x128xf32>
    tpu.vector_store %arg8[%c0_53, %c0_54], %91 {strides = array<i32>} : memref<8x128xf32, #tpu.memory_space<vmem>>, vector<8x128xf32>,
    return
  }
  func.func @transform_0(%arg0: i32) -> (i32, i32) {
    %c0_i32 = arith.constant 0 : i32
    %c0_i32_0 = arith.constant 0 : i32
    return %arg0, %c0_i32 : i32, i32
  }
  func.func @transform_1(%arg0: i32) -> (i32, i32, i32) {
    %c0_i32 = arith.constant 0 : i32
    %c0_i32_0 = arith.constant 0 : i32
    %c0_i32_1 = arith.constant 0 : i32
    %c0_i32_2 = arith.constant 0 : i32
    return %c0_i32, %c0_i32_0, %c0_i32_1 : i32, i32, i32
  }
  func.func @transform_2(%arg0: i32) -> (i32, i32) {
    %c0_i32 = arith.constant 0 : i32
    %c0_i32_0 = arith.constant 0 : i32
    %c0_i32_1 = arith.constant 0 : i32
    return %c0_i32, %c0_i32_0 : i32, i32
  }
  func.func @transform_3(%arg0: i32) -> (i32, i32, i32) {
    %c0_i32 = arith.constant 0 : i32
    %c0_i32_0 = arith.constant 0 : i32
    %c0_i32_1 = arith.constant 0 : i32
    %c0_i32_2 = arith.constant 0 : i32
    return %c0_i32, %c0_i32_0, %c0_i32_1 : i32, i32, i32
  }
  func.func @transform_4(%arg0: i32) -> (i32, i32, i32) {
    %c0_i32 = arith.constant 0 : i32
    %c0_i32_0 = arith.constant 0 : i32
    %c0_i32_1 = arith.constant 0 : i32
    %c0_i32_2 = arith.constant 0 : i32
    return %c0_i32, %c0_i32_0, %c0_i32_1 : i32, i32, i32
  }
  func.func @transform_5(%arg0: i32) -> (i32, i32) {
    %c0_i32 = arith.constant 0 : i32
    %c0_i32_0 = arith.constant 0 : i32
    %c0_i32_1 = arith.constant 0 : i32
    return %c0_i32, %c0_i32_0 : i32, i32
  }
  func.func @transform_6(%arg0: i32) -> (i32, i32) {
    %c0_i32 = arith.constant 0 : i32
    %c0_i32_0 = arith.constant 0 : i32
    %c0_i32_1 = arith.constant 0 : i32
    return %c0_i32, %c0_i32_0 : i32, i32
  }
  func.func @transform_7(%arg0: i32) -> (i32, i32) {
    %c0_i32 = arith.constant 0 : i32
    %c0_i32_0 = arith.constant 0 : i32
    return %arg0, %c0_i32 : i32, i32
  }
}

</mosaic_0001>

<llo_original>
// kernel: elmo_character_encoder_forward.1
$region0: #{elmo_character_encoder_forward.1}
  #allocation0 [shape = 'u32[]', space=smem, size = 0x4, offset = 0x4, fixed_abs, tag = 'smem constant byte address 0x4 - core index']
  #allocation1 [shape = 'u32[144,128]{1,0:T(1,128)}', space=vmem, size = 0x12000, scoped, tag = 'internal scratch']
  %s0 = inlined_call_operand.vmem [shape: bf16[32,128], index: 0, kind: input, shape index: {}]
  %s1 = inlined_call_operand.vmem [shape: bf16[8,128,128], index: 1, kind: input, shape index: {}]
  %s2 = inlined_call_operand.vmem [shape: f32[1,128], index: 2, kind: input, shape index: {}]
  %s3 = inlined_call_operand.vmem [shape: bf16[2,128,256], index: 3, kind: input, shape index: {}]
  %s4 = inlined_call_operand.vmem [shape: f32[2,1,256], index: 4, kind: input, shape index: {}]
  %s5 = inlined_call_operand.vmem [shape: bf16[512,128], index: 5, kind: input, shape index: {}]
  %s6 = inlined_call_operand.vmem [shape: f32[1,128], index: 6, kind: input, shape index: {}]
  %s7 = inlined_call_operand.vmem [shape: f32[8,128], index: 7, kind: output, shape index: {}]
  %s8 = sld [smem:[#allocation0]]
  $region38: #{elmo_character_encoder_forward.1} parent=0
    _
  %s10 = ssub.s32 1, %s8
  %s11 = scalar_select 0, %s10, %s8
  // Predicated region
  $region2: #{elmo_character_encoder_forward.1} parent=0 // pred_check
    _
  $region3: #{elmo_character_encoder_forward.1} parent=0 // pred_check_branch
    %13 = sbr.rel (0) target = $region5
  $region4: #{elmo_character_encoder_forward.1} parent=0 // pred_region
    _
  $region5: #{elmo_character_encoder_forward.1} parent=0 // pred_fallthru
    _
  // Predicated region
  $region6: #{elmo_character_encoder_forward.1} parent=0 // pred_check
    _
  $region7: #{elmo_character_encoder_forward.1} parent=0 // pred_check_branch
    %15 = sbr.rel (0) target = $region9
  $region8: #{elmo_character_encoder_forward.1} parent=0 // pred_region
    _
  $region9: #{elmo_character_encoder_forward.1} parent=0 // pred_fallthru
    _
  // Predicated region
  $region10: #{elmo_character_encoder_forward.1} parent=0 // pred_check
    _
  $region11: #{elmo_character_encoder_forward.1} parent=0 // pred_check_branch
    %17 = sbr.rel (0) target = $region13
  $region12: #{elmo_character_encoder_forward.1} parent=0 // pred_region
    _
  $region13: #{elmo_character_encoder_forward.1} parent=0 // pred_fallthru
    _
  // Predicated region
  $region14: #{elmo_character_encoder_forward.1} parent=0 // pred_check
    _
  $region15: #{elmo_character_encoder_forward.1} parent=0 // pred_check_branch
    %19 = sbr.rel (0) target = $region17
  $region16: #{elmo_character_encoder_forward.1} parent=0 // pred_region
    _
  $region17: #{elmo_character_encoder_forward.1} parent=0 // pred_fallthru
    _
  // Predicated region
  $region18: #{elmo_character_encoder_forward.1} parent=0 // pred_check
    _
  $region19: #{elmo_character_encoder_forward.1} parent=0 // pred_check_branch
    %21 = sbr.rel (0) target = $region21
  $region20: #{elmo_character_encoder_forward.1} parent=0 // pred_region
    _
  $region21: #{elmo_character_encoder_forward.1} parent=0 // pred_fallthru
    _
  // Predicated region
  $region22: #{elmo_character_encoder_forward.1} parent=0 // pred_check
    _
  $region23: #{elmo_character_encoder_forward.1} parent=0 // pred_check_branch
    %23 = sbr.rel (0) target = $region25
  $region24: #{elmo_character_encoder_forward.1} parent=0 // pred_region
    _
  $region25: #{elmo_character_encoder_forward.1} parent=0 // pred_fallthru
    _
  // Predicated region
  $region26: #{elmo_character_encoder_forward.1} parent=0 // pred_check
    _
  $region27: #{elmo_character_encoder_forward.1} parent=0 // pred_check_branch
    %25 = sbr.rel (0) target = $region29
  $region28: #{elmo_character_encoder_forward.1} parent=0 // pred_region
    _
  $region29: #{elmo_character_encoder_forward.1} parent=0 // pred_fallthru
    _
  %v27 = vld [vmem:[%s0] sm:$0xf]
  %v28 = vld [vmem:[%s0 + $0x4] sm:$0xf]
  %v29 = vld [vmem:[%s0 + $0x8] sm:$0xf]
  %v30 = vld [vmem:[%s0 + $0xc] sm:$0xf]
  %v31 = vld [vmem:[%s1] sm:$0xf]
  %v32 = vld [vmem:[%s1 + $0x4] sm:$0xf]
  %v33 = vld [vmem:[%s1 + $0x8] sm:$0xf]
  %v34 = vld [vmem:[%s1 + $0xc] sm:$0xf]
  %v35 = vld [vmem:[%s1 + $0x10] sm:$0xf]
  %v36 = vld [vmem:[%s1 + $0x14] sm:$0xf]
  %v37 = vld [vmem:[%s1 + $0x18] sm:$0xf]
  %v38 = vld [vmem:[%s1 + $0x1c] sm:$0xf]
  %v39 = vld [vmem:[%s1 + $0x20] sm:$0xf]
  %v40 = vld [vmem:[%s1 + $0x24] sm:$0xf]
  %v41 = vld [vmem:[%s1 + $0x28] sm:$0xf]
  %v42 = vld [vmem:[%s1 + $0x2c] sm:$0xf]
  %v43 = vld [vmem:[%s1 + $0x30] sm:$0xf]
  %v44 = vld [vmem:[%s1 + $0x34] sm:$0xf]
  %v45 = vld [vmem:[%s1 + $0x38] sm:$0xf]
  %v46 = vld [vmem:[%s1 + $0x3c] sm:$0xf]
  %v51 = vunpack.c.l.b16 %v27
  %v52 = vunpack.c.l.b16 %v28
  %v53 = vunpack.c.l.b16 %v29
  %v54 = vunpack.c.l.b16 %v30
  %v55 = vpack.c.b16 %v52, %v51
  %v56 = vpack.c.b16 %v54, %v53
  %v75 = vunpack.c.l.b16 %v31
  %v76 = vunpack.c.l.b16 %v32
  %v77 = vunpack.c.l.b16 %v33
  %v78 = vunpack.c.l.b16 %v34
  %v79 = vunpack.c.l.b16 %v35
  %v80 = vunpack.c.l.b16 %v36
  %v81 = vunpack.c.l.b16 %v37
  %v82 = vunpack.c.l.b16 %v38
  %v83 = vunpack.c.l.b16 %v39
  %v84 = vunpack.c.l.b16 %v40
  %v85 = vunpack.c.l.b16 %v41
  %v86 = vunpack.c.l.b16 %v42
  %v87 = vunpack.c.l.b16 %v43
  %v88 = vunpack.c.l.b16 %v44
  %v89 = vunpack.c.l.b16 %v45
  %v90 = vunpack.c.l.b16 %v46
  %v91 = vpack.c.b16 %v76, %v75
  %v92 = vpack.c.b16 %v78, %v77
  %v93 = vpack.c.b16 %v80, %v79
  %v94 = vpack.c.b16 %v82, %v81
  %v95 = vpack.c.b16 %v84, %v83
  %v96 = vpack.c.b16 %v86, %v85
  %v97 = vpack.c.b16 %v88, %v87
  %v98 = vpack.c.b16 %v90, %v89
  %107 = vmatprep.subr.bf16.mxu0 0
  %108 = vmatpush1.bf16.msra.mxu0 %v98
  %109 = vmatprep.subr.bf16.mxu0 0
  %110 = vmatpush1.bf16.msra.mxu0 %v97
  %111 = vmatprep.subr.bf16.mxu0 0
  %112 = vmatpush1.bf16.msra.mxu0 %v96
  %113 = vmatprep.subr.bf16.mxu0 0
  %114 = vmatpush1.bf16.msra.mxu0 %v95
  %115 = vmatprep.subr.bf16.mxu0 0
  %116 = vmatpush1.bf16.msra.mxu0 %v94
  %117 = vmatprep.subr.bf16.mxu0 0
  %118 = vmatpush1.bf16.msra.mxu0 %v93
  %119 = vmatprep.subr.bf16.mxu0 0
  %120 = vmatpush1.bf16.msra.mxu0 %v92
  %121 = vmatprep.subr.bf16.mxu0 0
  %122 = vmatpush1.bf16.msra.mxu0 %v91
  %123 = vmatprep.subr.bf16.mxu0 0
  %124 = vmatpush2.bf16.msra.mxu0 0
  %125 = vmatprep.subr.bf16.mxu0 0
  %126 = vmatpush2.bf16.msra.mxu0 0
  %127 = vmatprep.subr.bf16.mxu0 0
  %128 = vmatpush2.bf16.msra.mxu0 0
  %129 = vmatprep.subr.bf16.mxu0 0
  %130 = vmatpush2.bf16.msra.mxu0 0
  %131 = vmatprep.subr.bf16.mxu0 0
  %132 = vmatpush2.bf16.msra.mxu0 0
  %133 = vmatprep.subr.bf16.mxu0 0
  %134 = vmatpush2.bf16.msra.mxu0 0
  %135 = vmatprep.subr.bf16.mxu0 0
  %136 = vmatpush2.bf16.msra.mxu0 0
  %137 = vmatprep.subr.bf16.mxu0 0
  %138 = vmatpush2.bf16.msra.mxu0 0
  %139 = vmatprep.mubr.bf16.mxu0 0
  %140 = vmatmul.mubr.bf16.gmra.mxu0 %v55
  %v141 = vpop.f32.mrf.mxu0
  %v142 = vadd.f32 0.0, %v141
  %v143 = vpop.f32.mrf.mxu0
  %v144 = vpop.f32.mrf.mxu0
  %v145 = vadd.f32 0.0, %v144
  %v146 = vpop.f32.mrf.mxu0
  %147 = vmatprep.mubr.bf16.mxu0 0
  %148 = vmatmul.mubr.bf16.gmra.mxu0 %v56
  %v149 = vpop.f32.mrf.mxu0
  %v150 = vadd.f32 0.0, %v149
  %v151 = vpop.f32.mrf.mxu0
  %v152 = vpop.f32.mrf.mxu0
  %v153 = vadd.f32 0.0, %v152
  %v154 = vpop.f32.mrf.mxu0
  %155 = vdwg.mxu0
  %s156 = scalar_lea.vmem %s1, 64
  %v157 = vld [vmem:[%s156] sm:$0xf]
  %v158 = vld [vmem:[%s156 + $0x4] sm:$0xf]
  %v159 = vld [vmem:[%s156 + $0x8] sm:$0xf]
  %v160 = vld [vmem:[%s156 + $0xc] sm:$0xf]
  %v161 = vld [vmem:[%s156 + $0x10] sm:$0xf]
  %v162 = vld [vmem:[%s156 + $0x14] sm:$0xf]
  %v163 = vld [vmem:[%s156 + $0x18] sm:$0xf]
  %v164 = vld [vmem:[%s156 + $0x1c] sm:$0xf]
  %v165 = vld [vmem:[%s156 + $0x20] sm:$0xf]
  %v166 = vld [vmem:[%s156 + $0x24] sm:$0xf]
  %v167 = vld [vmem:[%s156 + $0x28] sm:$0xf]
  %v168 = vld [vmem:[%s156 + $0x2c] sm:$0xf]
  %v169 = vld [vmem:[%s156 + $0x30] sm:$0xf]
  %v170 = vld [vmem:[%s156 + $0x34] sm:$0xf]
  %v171 = vld [vmem:[%s156 + $0x38] sm:$0xf]
  %v172 = vld [vmem:[%s156 + $0x3c] sm:$0xf]
  %v189 = vunpack.c.l.b16 %v157
  %v190 = vunpack.c.l.b16 %v158
  %v191 = vunpack.c.l.b16 %v159
  %v192 = vunpack.c.l.b16 %v160
  %v193 = vunpack.c.l.b16 %v161
  %v194 = vunpack.c.l.b16 %v162
  %v195 = vunpack.c.l.b16 %v163
  %v196 = vunpack.c.l.b16 %v164
  %v197 = vunpack.c.l.b16 %v165
  %v198 = vunpack.c.l.b16 %v166
  %v199 = vunpack.c.l.b16 %v167
  %v200 = vunpack.c.l.b16 %v168
  %v201 = vunpack.c.l.b16 %v169
  %v202 = vunpack.c.l.b16 %v170
  %v203 = vunpack.c.l.b16 %v171
  %v204 = vunpack.c.l.b16 %v172
  %v205 = vpack.c.b16 %v190, %v189
  %v206 = vpack.c.b16 %v192, %v191
  %v207 = vpack.c.b16 %v194, %v193
  %v208 = vpack.c.b16 %v196, %v195
  %v209 = vpack.c.b16 %v198, %v197
  %v210 = vpack.c.b16 %v200, %v199
  %v211 = vpack.c.b16 %v202, %v201
  %v212 = vpack.c.b16 %v204, %v203
  %221 = vmatprep.subr.bf16.mxu0 0
  %222 = vmatpush1.bf16.msra.mxu0 %v212
  %223 = vmatprep.subr.bf16.mxu0 0
  %224 = vmatpush1.bf16.msra.mxu0 %v211
  %225 = vmatprep.subr.bf16.mxu0 0
  %226 = vmatpush1.bf16.msra.mxu0 %v210
  %227 = vmatprep.subr.bf16.mxu0 0
  %228 = vmatpush1.bf16.msra.mxu0 %v209
  %229 = vmatprep.subr.bf16.mxu0 0
  %230 = vmatpush1.bf16.msra.mxu0 %v208
  %231 = vmatprep.subr.bf16.mxu0 0
  %232 = vmatpush1.bf16.msra.mxu0 %v207
  %233 = vmatprep.subr.bf16.mxu0 0
  %234 = vmatpush1.bf16.msra.mxu0 %v206
  %235 = vmatprep.subr.bf16.mxu0 0
  %236 = vmatpush1.bf16.msra.mxu0 %v205
  %237 = vmatprep.subr.bf16.mxu0 0
  %238 = vmatpush2.bf16.msra.mxu0 0
  %239 = vmatprep.subr.bf16.mxu0 0
  %240 = vmatpush2.bf16.msra.mxu0 0
  %241 = vmatprep.subr.bf16.mxu0 0
  %242 = vmatpush2.bf16.msra.mxu0 0
  %243 = vmatprep.subr.bf16.mxu0 0
  %244 = vmatpush2.bf16.msra.mxu0 0
  %245 = vmatprep.subr.bf16.mxu0 0
  %246 = vmatpush2.bf16.msra.mxu0 0
  %247 = vmatprep.subr.bf16.mxu0 0
  %248 = vmatpush2.bf16.msra.mxu0 0
  %249 = vmatprep.subr.bf16.mxu0 0
  %250 = vmatpush2.bf16.msra.mxu0 0
  %251 = vmatprep.subr.bf16.mxu0 0
  %252 = vmatpush2.bf16.msra.mxu0 0
  %253 = vmatprep.mubr.bf16.mxu0 0
  %254 = vmatmul.mubr.bf16.gmra.mxu0 %v55
  %v255 = vpop.f32.mrf.mxu0
  %v256 = vadd.f32 0.0, %v255
  %v257 = vpop.f32.mrf.mxu0
  %v258 = vpop.f32.mrf.mxu0
  %v259 = vadd.f32 0.0, %v258
  %v260 = vpop.f32.mrf.mxu0
  %261 = vmatprep.mubr.bf16.mxu0 0
  %262 = vmatmul.mubr.bf16.gmra.mxu0 %v56
  %v263 = vpop.f32.mrf.mxu0
  %v264 = vadd.f32 0.0, %v263
  %v265 = vpop.f32.mrf.mxu0
  %v266 = vpop.f32.mrf.mxu0
  %v267 = vadd.f32 0.0, %v266
  %v268 = vpop.f32.mrf.mxu0
  %269 = vdwg.mxu0
  %v270 = vmax.f32 %v142, %v256
  %v271 = vmax.f32 %v145, %v259
  %v272 = vmax.f32 %v150, %v264
  %v273 = vmax.f32 %v153, %v267
  %s274 = scalar_lea.vmem %s1, 128
  %v275 = vld [vmem:[%s274] sm:$0xf]
  %v276 = vld [vmem:[%s274 + $0x4] sm:$0xf]
  %v277 = vld [vmem:[%s274 + $0x8] sm:$0xf]
  %v278 = vld [vmem:[%s274 + $0xc] sm:$0xf]
  %v279 = vld [vmem:[%s274 + $0x10] sm:$0xf]
  %v280 = vld [vmem:[%s274 + $0x14] sm:$0xf]
  %v281 = vld [vmem:[%s274 + $0x18] sm:$0xf]
  %v282 = vld [vmem:[%s274 + $0x1c] sm:$0xf]
  %v283 = vld [vmem:[%s274 + $0x20] sm:$0xf]
  %v284 = vld [vmem:[%s274 + $0x24] sm:$0xf]
  %v285 = vld [vmem:[%s274 + $0x28] sm:$0xf]
  %v286 = vld [vmem:[%s274 + $0x2c] sm:$0xf]
  %v287 = vld [vmem:[%s274 + $0x30] sm:$0xf]
  %v288 = vld [vmem:[%s274 + $0x34] sm:$0xf]
  %v289 = vld [vmem:[%s274 + $0x38] sm:$0xf]
  %v290 = vld [vmem:[%s274 + $0x3c] sm:$0xf]
  %v307 = vunpack.c.l.b16 %v275
  %v308 = vunpack.c.l.b16 %v276
  %v309 = vunpack.c.l.b16 %v277
  %v310 = vunpack.c.l.b16 %v278
  %v311 = vunpack.c.l.b16 %v279
  %v312 = vunpack.c.l.b16 %v280
  %v313 = vunpack.c.l.b16 %v281
  %v314 = vunpack.c.l.b16 %v282
  %v315 = vunpack.c.l.b16 %v283
  %v316 = vunpack.c.l.b16 %v284
  %v317 = vunpack.c.l.b16 %v285
  %v318 = vunpack.c.l.b16 %v286
  %v319 = vunpack.c.l.b16 %v287
  %v320 = vunpack.c.l.b16 %v288
  %v321 = vunpack.c.l.b16 %v289
  %v322 = vunpack.c.l.b16 %v290
  %v323 = vpack.c.b16 %v308, %v307
  %v324 = vpack.c.b16 %v310, %v309
  %v325 = vpack.c.b16 %v312, %v311
  %v326 = vpack.c.b16 %v314, %v313
  %v327 = vpack.c.b16 %v316, %v315
  %v328 = vpack.c.b16 %v318, %v317
  %v329 = vpack.c.b16 %v320, %v319
  %v330 = vpack.c.b16 %v322, %v321
  %339 = vmatprep.subr.bf16.mxu0 0
  %340 = vmatpush1.bf16.msra.mxu0 %v330
  %341 = vmatprep.subr.bf16.mxu0 0
  %342 = vmatpush1.bf16.msra.mxu0 %v329
  %343 = vmatprep.subr.bf16.mxu0 0
  %344 = vmatpush1.bf16.msra.mxu0 %v328
  %345 = vmatprep.subr.bf16.mxu0 0
  %346 = vmatpush1.bf16.msra.mxu0 %v327
  %347 = vmatprep.subr.bf16.mxu0 0
  %348 = vmatpush1.bf16.msra.mxu0 %v326
  %349 = vmatprep.subr.bf16.mxu0 0
  %350 = vmatpush1.bf16.msra.mxu0 %v325
  %351 = vmatprep.subr.bf16.mxu0 0
  %352 = vmatpush1.bf16.msra.mxu0 %v324
  %353 = vmatprep.subr.bf16.mxu0 0
  %354 = vmatpush1.bf16.msra.mxu0 %v323
  %355 = vmatprep.subr.bf16.mxu0 0
  %356 = vmatpush2.bf16.msra.mxu0 0
  %357 = vmatprep.subr.bf16.mxu0 0
  %358 = vmatpush2.bf16.msra.mxu0 0
  %359 = vmatprep.subr.bf16.mxu0 0
  %360 = vmatpush2.bf16.msra.mxu0 0
  %361 = vmatprep.subr.bf16.mxu0 0
  %362 = vmatpush2.bf16.msra.mxu0 0
  %363 = vmatprep.subr.bf16.mxu0 0
  %364 = vmatpush2.bf16.msra.mxu0 0
  %365 = vmatprep.subr.bf16.mxu0 0
  %366 = vmatpush2.bf16.msra.mxu0 0
  %367 = vmatprep.subr.bf16.mxu0 0
  %368 = vmatpush2.bf16.msra.mxu0 0
  %369 = vmatprep.subr.bf16.mxu0 0
  %370 = vmatpush2.bf16.msra.mxu0 0
  %371 = vmatprep.mubr.bf16.mxu0 0
  %372 = vmatmul.mubr.bf16.gmra.mxu0 %v55
  %v373 = vpop.f32.mrf.mxu0
  %v374 = vadd.f32 0.0, %v373
  %v375 = vpop.f32.mrf.mxu0
  %v376 = vpop.f32.mrf.mxu0
  %v377 = vadd.f32 0.0, %v376
  %v378 = vpop.f32.mrf.mxu0
  %379 = vmatprep.mubr.bf16.mxu0 0
  %380 = vmatmul.mubr.bf16.gmra.mxu0 %v56
  %v381 = vpop.f32.mrf.mxu0
  %v382 = vadd.f32 0.0, %v381
  %v383 = vpop.f32.mrf.mxu0
  %v384 = vpop.f32.mrf.mxu0
  %v385 = vadd.f32 0.0, %v384
  %v386 = vpop.f32.mrf.mxu0
  %387 = vdwg.mxu0
  %v388 = vmax.f32 %v270, %v374
  %v389 = vmax.f32 %v271, %v377
  %v390 = vmax.f32 %v272, %v382
  %v391 = vmax.f32 %v273, %v385
  %s392 = scalar_lea.vmem %s1, 192
  %v393 = vld [vmem:[%s392] sm:$0xf]
  %v394 = vld [vmem:[%s392 + $0x4] sm:$0xf]
  %v395 = vld [vmem:[%s392 + $0x8] sm:$0xf]
  %v396 = vld [vmem:[%s392 + $0xc] sm:$0xf]
  %v397 = vld [vmem:[%s392 + $0x10] sm:$0xf]
  %v398 = vld [vmem:[%s392 + $0x14] sm:$0xf]
  %v399 = vld [vmem:[%s392 + $0x18] sm:$0xf]
  %v400 = vld [vmem:[%s392 + $0x1c] sm:$0xf]
  %v401 = vld [vmem:[%s392 + $0x20] sm:$0xf]
  %v402 = vld [vmem:[%s392 + $0x24] sm:$0xf]
  %v403 = vld [vmem:[%s392 + $0x28] sm:$0xf]
  %v404 = vld [vmem:[%s392 + $0x2c] sm:$0xf]
  %v405 = vld [vmem:[%s392 + $0x30] sm:$0xf]
  %v406 = vld [vmem:[%s392 + $0x34] sm:$0xf]
  %v407 = vld [vmem:[%s392 + $0x38] sm:$0xf]
  %v408 = vld [vmem:[%s392 + $0x3c] sm:$0xf]
  %v425 = vunpack.c.l.b16 %v393
  %v426 = vunpack.c.l.b16 %v394
  %v427 = vunpack.c.l.b16 %v395
  %v428 = vunpack.c.l.b16 %v396
  %v429 = vunpack.c.l.b16 %v397
  %v430 = vunpack.c.l.b16 %v398
  %v431 = vunpack.c.l.b16 %v399
  %v432 = vunpack.c.l.b16 %v400
  %v433 = vunpack.c.l.b16 %v401
  %v434 = vunpack.c.l.b16 %v402
  %v435 = vunpack.c.l.b16 %v403
  %v436 = vunpack.c.l.b16 %v404
  %v437 = vunpack.c.l.b16 %v405
  %v438 = vunpack.c.l.b16 %v406
  %v439 = vunpack.c.l.b16 %v407
  %v440 = vunpack.c.l.b16 %v408
  %v441 = vpack.c.b16 %v426, %v425
  %v442 = vpack.c.b16 %v428, %v427
  %v443 = vpack.c.b16 %v430, %v429
  %v444 = vpack.c.b16 %v432, %v431
  %v445 = vpack.c.b16 %v434, %v433
  %v446 = vpack.c.b16 %v436, %v435
  %v447 = vpack.c.b16 %v438, %v437
  %v448 = vpack.c.b16 %v440, %v439
  %457 = vmatprep.subr.bf16.mxu0 0
  %458 = vmatpush1.bf16.msra.mxu0 %v448
  %459 = vmatprep.subr.bf16.mxu0 0
  %460 = vmatpush1.bf16.msra.mxu0 %v447
  %461 = vmatprep.subr.bf16.mxu0 0
  %462 = vmatpush1.bf16.msra.mxu0 %v446
  %463 = vmatprep.subr.bf16.mxu0 0
  %464 = vmatpush1.bf16.msra.mxu0 %v445
  %465 = vmatprep.subr.bf16.mxu0 0
  %466 = vmatpush1.bf16.msra.mxu0 %v444
  %467 = vmatprep.subr.bf16.mxu0 0
  %468 = vmatpush1.bf16.msra.mxu0 %v443
  %469 = vmatprep.subr.bf16.mxu0 0
  %470 = vmatpush1.bf16.msra.mxu0 %v442
  %471 = vmatprep.subr.bf16.mxu0 0
  %472 = vmatpush1.bf16.msra.mxu0 %v441
  %473 = vmatprep.subr.bf16.mxu0 0
  %474 = vmatpush2.bf16.msra.mxu0 0
  %475 = vmatprep.subr.bf16.mxu0 0
  %476 = vmatpush2.bf16.msra.mxu0 0
  %477 = vmatprep.subr.bf16.mxu0 0
  %478 = vmatpush2.bf16.msra.mxu0 0
  %479 = vmatprep.subr.bf16.mxu0 0
  %480 = vmatpush2.bf16.msra.mxu0 0
  %481 = vmatprep.subr.bf16.mxu0 0
  %482 = vmatpush2.bf16.msra.mxu0 0
  %483 = vmatprep.subr.bf16.mxu0 0
  %484 = vmatpush2.bf16.msra.mxu0 0
  %485 = vmatprep.subr.bf16.mxu0 0
  %486 = vmatpush2.bf16.msra.mxu0 0
  %487 = vmatprep.subr.bf16.mxu0 0
  %488 = vmatpush2.bf16.msra.mxu0 0
  %489 = vmatprep.mubr.bf16.mxu0 0
  %490 = vmatmul.mubr.bf16.gmra.mxu0 %v55
  %v491 = vpop.f32.mrf.mxu0
  %v492 = vadd.f32 0.0, %v491
  %v493 = vpop.f32.mrf.mxu0
  %v494 = vpop.f32.mrf.mxu0
  %v495 = vadd.f32 0.0, %v494
  %v496 = vpop.f32.mrf.mxu0
  %497 = vmatprep.mubr.bf16.mxu0 0
  %498 = vmatmul.mubr.bf16.gmra.mxu0 %v56
  %v499 = vpop.f32.mrf.mxu0
  %v500 = vadd.f32 0.0, %v499
  %v501 = vpop.f32.mrf.mxu0
  %v502 = vpop.f32.mrf.mxu0
  %v503 = vadd.f32 0.0, %v502
  %v504 = vpop.f32.mrf.mxu0
  %505 = vdwg.mxu0
  %v506 = vmax.f32 %v388, %v492
  %v507 = vmax.f32 %v389, %v495
  %v508 = vmax.f32 %v390, %v500
  %v509 = vmax.f32 %v391, %v503
  %s510 = scalar_lea.vmem %s1, 256
  %v511 = vld [vmem:[%s510] sm:$0xf]
  %v512 = vld [vmem:[%s510 + $0x4] sm:$0xf]
  %v513 = vld [vmem:[%s510 + $0x8] sm:$0xf]
  %v514 = vld [vmem:[%s510 + $0xc] sm:$0xf]
  %v515 = vld [vmem:[%s510 + $0x10] sm:$0xf]
  %v516 = vld [vmem:[%s510 + $0x14] sm:$0xf]
  %v517 = vld [vmem:[%s510 + $0x18] sm:$0xf]
  %v518 = vld [vmem:[%s510 + $0x1c] sm:$0xf]
  %v519 = vld [vmem:[%s510 + $0x20] sm:$0xf]
  %v520 = vld [vmem:[%s510 + $0x24] sm:$0xf]
  %v521 = vld [vmem:[%s510 + $0x28] sm:$0xf]
  %v522 = vld [vmem:[%s510 + $0x2c] sm:$0xf]
  %v523 = vld [vmem:[%s510 + $0x30] sm:$0xf]
  %v524 = vld [vmem:[%s510 + $0x34] sm:$0xf]
  %v525 = vld [vmem:[%s510 + $0x38] sm:$0xf]
  %v526 = vld [vmem:[%s510 + $0x3c] sm:$0xf]
  %v543 = vunpack.c.l.b16 %v511
  %v544 = vunpack.c.l.b16 %v512
  %v545 = vunpack.c.l.b16 %v513
  %v546 = vunpack.c.l.b16 %v514
  %v547 = vunpack.c.l.b16 %v515
  %v548 = vunpack.c.l.b16 %v516
  %v549 = vunpack.c.l.b16 %v517
  %v550 = vunpack.c.l.b16 %v518
  %v551 = vunpack.c.l.b16 %v519
  %v552 = vunpack.c.l.b16 %v520
  %v553 = vunpack.c.l.b16 %v521
  %v554 = vunpack.c.l.b16 %v522
  %v555 = vunpack.c.l.b16 %v523
  %v556 = vunpack.c.l.b16 %v524
  %v557 = vunpack.c.l.b16 %v525
  %v558 = vunpack.c.l.b16 %v526
  %v559 = vpack.c.b16 %v544, %v543
  %v560 = vpack.c.b16 %v546, %v545
  %v561 = vpack.c.b16 %v548, %v547
  %v562 = vpack.c.b16 %v550, %v549
  %v563 = vpack.c.b16 %v552, %v551
  %v564 = vpack.c.b16 %v554, %v553
  %v565 = vpack.c.b16 %v556, %v555
  %v566 = vpack.c.b16 %v558, %v557
  %575 = vmatprep.subr.bf16.mxu0 0
  %576 = vmatpush1.bf16.msra.mxu0 %v566
  %577 = vmatprep.subr.bf16.mxu0 0
  %578 = vmatpush1.bf16.msra.mxu0 %v565
  %579 = vmatprep.subr.bf16.mxu0 0
  %580 = vmatpush1.bf16.msra.mxu0 %v564
  %581 = vmatprep.subr.bf16.mxu0 0
  %582 = vmatpush1.bf16.msra.mxu0 %v563
  %583 = vmatprep.subr.bf16.mxu0 0
  %584 = vmatpush1.bf16.msra.mxu0 %v562
  %585 = vmatprep.subr.bf16.mxu0 0
  %586 = vmatpush1.bf16.msra.mxu0 %v561
  %587 = vmatprep.subr.bf16.mxu0 0
  %588 = vmatpush1.bf16.msra.mxu0 %v560
  %589 = vmatprep.subr.bf16.mxu0 0
  %590 = vmatpush1.bf16.msra.mxu0 %v559
  %591 = vmatprep.subr.bf16.mxu0 0
  %592 = vmatpush2.bf16.msra.mxu0 0
  %593 = vmatprep.subr.bf16.mxu0 0
  %594 = vmatpush2.bf16.msra.mxu0 0
  %595 = vmatprep.subr.bf16.mxu0 0
  %596 = vmatpush2.bf16.msra.mxu0 0
  %597 = vmatprep.subr.bf16.mxu0 0
  %598 = vmatpush2.bf16.msra.mxu0 0
  %599 = vmatprep.subr.bf16.mxu0 0
  %600 = vmatpush2.bf16.msra.mxu0 0
  %601 = vmatprep.subr.bf16.mxu0 0
  %602 = vmatpush2.bf16.msra.mxu0 0
  %603 = vmatprep.subr.bf16.mxu0 0
  %604 = vmatpush2.bf16.msra.mxu0 0
  %605 = vmatprep.subr.bf16.mxu0 0
  %606 = vmatpush2.bf16.msra.mxu0 0
  %607 = vmatprep.mubr.bf16.mxu0 0
  %608 = vmatmul.mubr.bf16.gmra.mxu0 %v55
  %v609 = vpop.f32.mrf.mxu0
  %v610 = vadd.f32 0.0, %v609
  %v611 = vpop.f32.mrf.mxu0
  %v612 = vpop.f32.mrf.mxu0
  %v613 = vadd.f32 0.0, %v612
  %v614 = vpop.f32.mrf.mxu0
  %615 = vmatprep.mubr.bf16.mxu0 0
  %616 = vmatmul.mubr.bf16.gmra.mxu0 %v56
  %v617 = vpop.f32.mrf.mxu0
  %v618 = vadd.f32 0.0, %v617
  %v619 = vpop.f32.mrf.mxu0
  %v620 = vpop.f32.mrf.mxu0
  %v621 = vadd.f32 0.0, %v620
  %v622 = vpop.f32.mrf.mxu0
  %623 = vdwg.mxu0
  %v624 = vmax.f32 %v506, %v610
  %v625 = vmax.f32 %v507, %v613
  %v626 = vmax.f32 %v508, %v618
  %v627 = vmax.f32 %v509, %v621
  %s628 = scalar_lea.vmem %s1, 320
  %v629 = vld [vmem:[%s628] sm:$0xf]
  %v630 = vld [vmem:[%s628 + $0x4] sm:$0xf]
  %v631 = vld [vmem:[%s628 + $0x8] sm:$0xf]
  %v632 = vld [vmem:[%s628 + $0xc] sm:$0xf]
  %v633 = vld [vmem:[%s628 + $0x10] sm:$0xf]
  %v634 = vld [vmem:[%s628 + $0x14] sm:$0xf]
  %v635 = vld [vmem:[%s628 + $0x18] sm:$0xf]
  %v636 = vld [vmem:[%s628 + $0x1c] sm:$0xf]
  %v637 = vld [vmem:[%s628 + $0x20] sm:$0xf]
  %v638 = vld [vmem:[%s628 + $0x24] sm:$0xf]
  %v639 = vld [vmem:[%s628 + $0x28] sm:$0xf]
  %v640 = vld [vmem:[%s628 + $0x2c] sm:$0xf]
  %v641 = vld [vmem:[%s628 + $0x30] sm:$0xf]
  %v642 = vld [vmem:[%s628 + $0x34] sm:$0xf]
  %v643 = vld [vmem:[%s628 + $0x38] sm:$0xf]
  %v644 = vld [vmem:[%s628 + $0x3c] sm:$0xf]
  %v661 = vunpack.c.l.b16 %v629
  %v662 = vunpack.c.l.b16 %v630
  %v663 = vunpack.c.l.b16 %v631
  %v664 = vunpack.c.l.b16 %v632
  %v665 = vunpack.c.l.b16 %v633
  %v666 = vunpack.c.l.b16 %v634
  %v667 = vunpack.c.l.b16 %v635
  %v668 = vunpack.c.l.b16 %v636
  %v669 = vunpack.c.l.b16 %v637
  %v670 = vunpack.c.l.b16 %v638
  %v671 = vunpack.c.l.b16 %v639
  %v672 = vunpack.c.l.b16 %v640
  %v673 = vunpack.c.l.b16 %v641
  %v674 = vunpack.c.l.b16 %v642
  %v675 = vunpack.c.l.b16 %v643
  %v676 = vunpack.c.l.b16 %v644
  %v677 = vpack.c.b16 %v662, %v661
  %v678 = vpack.c.b16 %v664, %v663
  %v679 = vpack.c.b16 %v666, %v665
  %v680 = vpack.c.b16 %v668, %v667
  %v681 = vpack.c.b16 %v670, %v669
  %v682 = vpack.c.b16 %v672, %v671
  %v683 = vpack.c.b16 %v674, %v673
  %v684 = vpack.c.b16 %v676, %v675
  %693 = vmatprep.subr.bf16.mxu0 0
  %694 = vmatpush1.bf16.msra.mxu0 %v684
  %695 = vmatprep.subr.bf16.mxu0 0
  %696 = vmatpush1.bf16.msra.mxu0 %v683
  %697 = vmatprep.subr.bf16.mxu0 0
  %698 = vmatpush1.bf16.msra.mxu0 %v682
  %699 = vmatprep.subr.bf16.mxu0 0
  %700 = vmatpush1.bf16.msra.mxu0 %v681
  %701 = vmatprep.subr.bf16.mxu0 0
  %702 = vmatpush1.bf16.msra.mxu0 %v680
  %703 = vmatprep.subr.bf16.mxu0 0
  %704 = vmatpush1.bf16.msra.mxu0 %v679
  %705 = vmatprep.subr.bf16.mxu0 0
  %706 = vmatpush1.bf16.msra.mxu0 %v678
  %707 = vmatprep.subr.bf16.mxu0 0
  %708 = vmatpush1.bf16.msra.mxu0 %v677
  %709 = vmatprep.subr.bf16.mxu0 0
  %710 = vmatpush2.bf16.msra.mxu0 0
  %711 = vmatprep.subr.bf16.mxu0 0
  %712 = vmatpush2.bf16.msra.mxu0 0
  %713 = vmatprep.subr.bf16.mxu0 0
  %714 = vmatpush2.bf16.msra.mxu0 0
  %715 = vmatprep.subr.bf16.mxu0 0
  %716 = vmatpush2.bf16.msra.mxu0 0
  %717 = vmatprep.subr.bf16.mxu0 0
  %718 = vmatpush2.bf16.msra.mxu0 0
  %719 = vmatprep.subr.bf16.mxu0 0
  %720 = vmatpush2.bf16.msra.mxu0 0
  %721 = vmatprep.subr.bf16.mxu0 0
  %722 = vmatpush2.bf16.msra.mxu0 0
  %723 = vmatprep.subr.bf16.mxu0 0
  %724 = vmatpush2.bf16.msra.mxu0 0
  %725 = vmatprep.mubr.bf16.mxu0 0
  %726 = vmatmul.mubr.bf16.gmra.mxu0 %v55
  %v727 = vpop.f32.mrf.mxu0
  %v728 = vadd.f32 0.0, %v727
  %v729 = vpop.f32.mrf.mxu0
  %v730 = vpop.f32.mrf.mxu0
  %v731 = vadd.f32 0.0, %v730
  %v732 = vpop.f32.mrf.mxu0
  %733 = vmatprep.mubr.bf16.mxu0 0
  %734 = vmatmul.mubr.bf16.gmra.mxu0 %v56
  %v735 = vpop.f32.mrf.mxu0
  %v736 = vadd.f32 0.0, %v735
  %v737 = vpop.f32.mrf.mxu0
  %v738 = vpop.f32.mrf.mxu0
  %v739 = vadd.f32 0.0, %v738
  %v740 = vpop.f32.mrf.mxu0
  %741 = vdwg.mxu0
  %v742 = vmax.f32 %v624, %v728
  %v743 = vmax.f32 %v625, %v731
  %v744 = vmax.f32 %v626, %v736
  %v745 = vmax.f32 %v627, %v739
  %s746 = scalar_lea.vmem %s1, 384
  %v747 = vld [vmem:[%s746] sm:$0xf]
  %v748 = vld [vmem:[%s746 + $0x4] sm:$0xf]
  %v749 = vld [vmem:[%s746 + $0x8] sm:$0xf]
  %v750 = vld [vmem:[%s746 + $0xc] sm:$0xf]
  %v751 = vld [vmem:[%s746 + $0x10] sm:$0xf]
  %v752 = vld [vmem:[%s746 + $0x14] sm:$0xf]
  %v753 = vld [vmem:[%s746 + $0x18] sm:$0xf]
  %v754 = vld [vmem:[%s746 + $0x1c] sm:$0xf]
  %v755 = vld [vmem:[%s746 + $0x20] sm:$0xf]
  %v756 = vld [vmem:[%s746 + $0x24] sm:$0xf]
  %v757 = vld [vmem:[%s746 + $0x28] sm:$0xf]
  %v758 = vld [vmem:[%s746 + $0x2c] sm:$0xf]
  %v759 = vld [vmem:[%s746 + $0x30] sm:$0xf]
  %v760 = vld [vmem:[%s746 + $0x34] sm:$0xf]
  %v761 = vld [vmem:[%s746 + $0x38] sm:$0xf]
  %v762 = vld [vmem:[%s746 + $0x3c] sm:$0xf]
  %v779 = vunpack.c.l.b16 %v747
  %v780 = vunpack.c.l.b16 %v748
  %v781 = vunpack.c.l.b16 %v749
  %v782 = vunpack.c.l.b16 %v750
  %v783 = vunpack.c.l.b16 %v751
  %v784 = vunpack.c.l.b16 %v752
  %v785 = vunpack.c.l.b16 %v753
  %v786 = vunpack.c.l.b16 %v754
  %v787 = vunpack.c.l.b16 %v755
  %v788 = vunpack.c.l.b16 %v756
  %v789 = vunpack.c.l.b16 %v757
  %v790 = vunpack.c.l.b16 %v758
  %v791 = vunpack.c.l.b16 %v759
  %v792 = vunpack.c.l.b16 %v760
  %v793 = vunpack.c.l.b16 %v761
  %v794 = vunpack.c.l.b16 %v762
  %v795 = vpack.c.b16 %v780, %v779
  %v796 = vpack.c.b16 %v782, %v781
  %v797 = vpack.c.b16 %v784, %v783
  %v798 = vpack.c.b16 %v786, %v785
  %v799 = vpack.c.b16 %v788, %v787
  %v800 = vpack.c.b16 %v790, %v789
  %v801 = vpack.c.b16 %v792, %v791
  %v802 = vpack.c.b16 %v794, %v793
  %811 = vmatprep.subr.bf16.mxu0 0
  %812 = vmatpush1.bf16.msra.mxu0 %v802
  %813 = vmatprep.subr.bf16.mxu0 0
  %814 = vmatpush1.bf16.msra.mxu0 %v801
  %815 = vmatprep.subr.bf16.mxu0 0
  %816 = vmatpush1.bf16.msra.mxu0 %v800
  %817 = vmatprep.subr.bf16.mxu0 0
  %818 = vmatpush1.bf16.msra.mxu0 %v799
  %819 = vmatprep.subr.bf16.mxu0 0
  %820 = vmatpush1.bf16.msra.mxu0 %v798
  %821 = vmatprep.subr.bf16.mxu0 0
  %822 = vmatpush1.bf16.msra.mxu0 %v797
  %823 = vmatprep.subr.bf16.mxu0 0
  %824 = vmatpush1.bf16.msra.mxu0 %v796
  %825 = vmatprep.subr.bf16.mxu0 0
  %826 = vmatpush1.bf16.msra.mxu0 %v795
  %827 = vmatprep.subr.bf16.mxu0 0
  %828 = vmatpush2.bf16.msra.mxu0 0
  %829 = vmatprep.subr.bf16.mxu0 0
  %830 = vmatpush2.bf16.msra.mxu0 0
  %831 = vmatprep.subr.bf16.mxu0 0
  %832 = vmatpush2.bf16.msra.mxu0 0
  %833 = vmatprep.subr.bf16.mxu0 0
  %834 = vmatpush2.bf16.msra.mxu0 0
  %835 = vmatprep.subr.bf16.mxu0 0
  %836 = vmatpush2.bf16.msra.mxu0 0
  %837 = vmatprep.subr.bf16.mxu0 0
  %838 = vmatpush2.bf16.msra.mxu0 0
  %839 = vmatprep.subr.bf16.mxu0 0
  %840 = vmatpush2.bf16.msra.mxu0 0
  %841 = vmatprep.subr.bf16.mxu0 0
  %842 = vmatpush2.bf16.msra.mxu0 0
  %843 = vmatprep.mubr.bf16.mxu0 0
  %844 = vmatmul.mubr.bf16.gmra.mxu0 %v55
  %v845 = vpop.f32.mrf.mxu0
  %v846 = vadd.f32 0.0, %v845
  %v847 = vpop.f32.mrf.mxu0
  %v848 = vpop.f32.mrf.mxu0
  %v849 = vadd.f32 0.0, %v848
  %v850 = vpop.f32.mrf.mxu0
  %851 = vmatprep.mubr.bf16.mxu0 0
  %852 = vmatmul.mubr.bf16.gmra.mxu0 %v56
  %v853 = vpop.f32.mrf.mxu0
  %v854 = vadd.f32 0.0, %v853
  %v855 = vpop.f32.mrf.mxu0
  %v856 = vpop.f32.mrf.mxu0
  %v857 = vadd.f32 0.0, %v856
  %v858 = vpop.f32.mrf.mxu0
  %859 = vdwg.mxu0
  %v860 = vmax.f32 %v742, %v846
  %v861 = vmax.f32 %v743, %v849
  %v862 = vmax.f32 %v744, %v854
  %v863 = vmax.f32 %v745, %v857
  %s864 = scalar_lea.vmem %s1, 448
  %v865 = vld [vmem:[%s864] sm:$0xf]
  %v866 = vld [vmem:[%s864 + $0x4] sm:$0xf]
  %v867 = vld [vmem:[%s864 + $0x8] sm:$0xf]
  %v868 = vld [vmem:[%s864 + $0xc] sm:$0xf]
  %v869 = vld [vmem:[%s864 + $0x10] sm:$0xf]
  %v870 = vld [vmem:[%s864 + $0x14] sm:$0xf]
  %v871 = vld [vmem:[%s864 + $0x18] sm:$0xf]
  %v872 = vld [vmem:[%s864 + $0x1c] sm:$0xf]
  %v873 = vld [vmem:[%s864 + $0x20] sm:$0xf]
  %v874 = vld [vmem:[%s864 + $0x24] sm:$0xf]
  %v875 = vld [vmem:[%s864 + $0x28] sm:$0xf]
  %v876 = vld [vmem:[%s864 + $0x2c] sm:$0xf]
  %v877 = vld [vmem:[%s864 + $0x30] sm:$0xf]
  %v878 = vld [vmem:[%s864 + $0x34] sm:$0xf]
  %v879 = vld [vmem:[%s864 + $0x38] sm:$0xf]
  %v880 = vld [vmem:[%s864 + $0x3c] sm:$0xf]
  %v897 = vunpack.c.l.b16 %v865
  %v898 = vunpack.c.l.b16 %v866
  %v899 = vunpack.c.l.b16 %v867
  %v900 = vunpack.c.l.b16 %v868
  %v901 = vunpack.c.l.b16 %v869
  %v902 = vunpack.c.l.b16 %v870
  %v903 = vunpack.c.l.b16 %v871
  %v904 = vunpack.c.l.b16 %v872
  %v905 = vunpack.c.l.b16 %v873
  %v906 = vunpack.c.l.b16 %v874
  %v907 = vunpack.c.l.b16 %v875
  %v908 = vunpack.c.l.b16 %v876
  %v909 = vunpack.c.l.b16 %v877
  %v910 = vunpack.c.l.b16 %v878
  %v911 = vunpack.c.l.b16 %v879
  %v912 = vunpack.c.l.b16 %v880
  %v913 = vpack.c.b16 %v898, %v897
  %v914 = vpack.c.b16 %v900, %v899
  %v915 = vpack.c.b16 %v902, %v901
  %v916 = vpack.c.b16 %v904, %v903
  %v917 = vpack.c.b16 %v906, %v905
  %v918 = vpack.c.b16 %v908, %v907
  %v919 = vpack.c.b16 %v910, %v909
  %v920 = vpack.c.b16 %v912, %v911
  %929 = vmatprep.subr.bf16.mxu0 0
  %930 = vmatpush1.bf16.msra.mxu0 %v920
  %931 = vmatprep.subr.bf16.mxu0 0
  %932 = vmatpush1.bf16.msra.mxu0 %v919
  %933 = vmatprep.subr.bf16.mxu0 0
  %934 = vmatpush1.bf16.msra.mxu0 %v918
  %935 = vmatprep.subr.bf16.mxu0 0
  %936 = vmatpush1.bf16.msra.mxu0 %v917
  %937 = vmatprep.subr.bf16.mxu0 0
  %938 = vmatpush1.bf16.msra.mxu0 %v916
  %939 = vmatprep.subr.bf16.mxu0 0
  %940 = vmatpush1.bf16.msra.mxu0 %v915
  %941 = vmatprep.subr.bf16.mxu0 0
  %942 = vmatpush1.bf16.msra.mxu0 %v914
  %943 = vmatprep.subr.bf16.mxu0 0
  %944 = vmatpush1.bf16.msra.mxu0 %v913
  %945 = vmatprep.subr.bf16.mxu0 0
  %946 = vmatpush2.bf16.msra.mxu0 0
  %947 = vmatprep.subr.bf16.mxu0 0
  %948 = vmatpush2.bf16.msra.mxu0 0
  %949 = vmatprep.subr.bf16.mxu0 0
  %950 = vmatpush2.bf16.msra.mxu0 0
  %951 = vmatprep.subr.bf16.mxu0 0
  %952 = vmatpush2.bf16.msra.mxu0 0
  %953 = vmatprep.subr.bf16.mxu0 0
  %954 = vmatpush2.bf16.msra.mxu0 0
  %955 = vmatprep.subr.bf16.mxu0 0
  %956 = vmatpush2.bf16.msra.mxu0 0
  %957 = vmatprep.subr.bf16.mxu0 0
  %958 = vmatpush2.bf16.msra.mxu0 0
  %959 = vmatprep.subr.bf16.mxu0 0
  %960 = vmatpush2.bf16.msra.mxu0 0
  %961 = vmatprep.mubr.bf16.mxu0 0
  %962 = vmatmul.mubr.bf16.gmra.mxu0 %v55
  %v963 = vpop.f32.mrf.mxu0
  %v964 = vadd.f32 0.0, %v963
  %v965 = vpop.f32.mrf.mxu0
  %v966 = vpop.f32.mrf.mxu0
  %v967 = vadd.f32 0.0, %v966
  %v968 = vpop.f32.mrf.mxu0
  %969 = vmatprep.mubr.bf16.mxu0 0
  %970 = vmatmul.mubr.bf16.gmra.mxu0 %v56
  %v971 = vpop.f32.mrf.mxu0
  %v972 = vadd.f32 0.0, %v971
  %v973 = vpop.f32.mrf.mxu0
  %v974 = vpop.f32.mrf.mxu0
  %v975 = vadd.f32 0.0, %v974
  %v976 = vpop.f32.mrf.mxu0
  %977 = vdwg.mxu0
  %v978 = vmax.f32 %v860, %v964
  %v979 = vmax.f32 %v861, %v967
  %v980 = vmax.f32 %v862, %v972
  %v981 = vmax.f32 %v863, %v975
  %v982 = vld [vmem:[%s2] sm:$0x1]
  %v984 = vlaneseq
  %v985 = vshrl.u32 %v984, 7
  %v986 = vsub.s32 0, %v985
  %v987 = vrot.slane %v982, %v986
  %v989 = vadd.f32 %v978, %v987
  %v990 = vadd.f32 %v979, %v987
  %v991 = vadd.f32 %v980, %v987
  %v992 = vadd.f32 %v981, %v987
  %v993 = vmax.f32 %v989, 0.0
  %v994 = vmax.f32 %v990, 0.0
  %v995 = vmax.f32 %v991, 0.0
  %v996 = vmax.f32 %v992, 0.0
  %v997 = vpack.c.bf16 %v994, %v993
  %v998 = vpack.c.bf16 %v996, %v995
  %v999 = vld [vmem:[%s3] sm:$0xff]
  %v1000 = vld [vmem:[%s3 + $0x8] sm:$0xff]
  %v1001 = vld [vmem:[%s3 + $0x10] sm:$0xff]
  %v1002 = vld [vmem:[%s3 + $0x18] sm:$0xff]
  %v1003 = vld [vmem:[%s3 + $0x20] sm:$0xff]
  %v1004 = vld [vmem:[%s3 + $0x28] sm:$0xff]
  %v1005 = vld [vmem:[%s3 + $0x30] sm:$0xff]
  %v1006 = vld [vmem:[%s3 + $0x38] sm:$0xff]
  %v1007 = vld [vmem:[%s3 + $0x40] sm:$0xff]
  %v1008 = vld [vmem:[%s3 + $0x48] sm:$0xff]
  %v1009 = vld [vmem:[%s3 + $0x50] sm:$0xff]
  %v1010 = vld [vmem:[%s3 + $0x58] sm:$0xff]
  %v1011 = vld [vmem:[%s3 + $0x60] sm:$0xff]
  %v1012 = vld [vmem:[%s3 + $0x68] sm:$0xff]
  %v1013 = vld [vmem:[%s3 + $0x70] sm:$0xff]
  %v1014 = vld [vmem:[%s3 + $0x78] sm:$0xff]
  %v1015 = vld [vmem:[%s4] sm:$0x3]
  %v1017 = vlaneseq
  %v1018 = vshrl.u32 %v1017, 7
  %v1019 = vsub.s32 0, %v1018
  %v1020 = vrot.slane %v1015, %v1019
  %v1021 = vlaneseq
  %v1022 = vshrl.u32 %v1021, 7
  %v1023 = vsub.s32 1, %v1022
  %v1024 = vrot.slane %v1015, %v1023
  %v1043 = vunpack.c.l.b16 %v999
  %v1044 = vunpack.c.h.b16 %v999
  %v1045 = vunpack.c.l.b16 %v1000
  %v1046 = vunpack.c.h.b16 %v1000
  %v1047 = vunpack.c.l.b16 %v1001
  %v1048 = vunpack.c.h.b16 %v1001
  %v1049 = vunpack.c.l.b16 %v1002
  %v1050 = vunpack.c.h.b16 %v1002
  %v1051 = vunpack.c.l.b16 %v1003
  %v1052 = vunpack.c.h.b16 %v1003
  %v1053 = vunpack.c.l.b16 %v1004
  %v1054 = vunpack.c.h.b16 %v1004
  %v1055 = vunpack.c.l.b16 %v1005
  %v1056 = vunpack.c.h.b16 %v1005
  %v1057 = vunpack.c.l.b16 %v1006
  %v1058 = vunpack.c.h.b16 %v1006
  %v1059 = vunpack.c.l.b16 %v1007
  %v1060 = vunpack.c.h.b16 %v1007
  %v1061 = vunpack.c.l.b16 %v1008
  %v1062 = vunpack.c.h.b16 %v1008
  %v1063 = vunpack.c.l.b16 %v1009
  %v1064 = vunpack.c.h.b16 %v1009
  %v1065 = vunpack.c.l.b16 %v1010
  %v1066 = vunpack.c.h.b16 %v1010
  %v1067 = vunpack.c.l.b16 %v1011
  %v1068 = vunpack.c.h.b16 %v1011
  %v1069 = vunpack.c.l.b16 %v1012
  %v1070 = vunpack.c.h.b16 %v1012
  %v1071 = vunpack.c.l.b16 %v1013
  %v1072 = vunpack.c.h.b16 %v1013
  %v1073 = vunpack.c.l.b16 %v1014
  %v1074 = vunpack.c.h.b16 %v1014
  %v1075 = vpack.c.b16 %v1045, %v1043
  %v1076 = vpack.c.b16 %v1046, %v1044
  %v1077 = vpack.c.b16 %v1049, %v1047
  %v1078 = vpack.c.b16 %v1050, %v1048
  %v1079 = vpack.c.b16 %v1053, %v1051
  %v1080 = vpack.c.b16 %v1054, %v1052
  %v1081 = vpack.c.b16 %v1057, %v1055
  %v1082 = vpack.c.b16 %v1058, %v1056
  %v1083 = vpack.c.b16 %v1061, %v1059
  %v1084 = vpack.c.b16 %v1062, %v1060
  %v1085 = vpack.c.b16 %v1065, %v1063
  %v1086 = vpack.c.b16 %v1066, %v1064
  %v1087 = vpack.c.b16 %v1069, %v1067
  %v1088 = vpack.c.b16 %v1070, %v1068
  %v1089 = vpack.c.b16 %v1073, %v1071
  %v1090 = vpack.c.b16 %v1074, %v1072
  %1107 = vmatprep.subr.bf16.mxu0 %v1090
  %1108 = vmatpush1.bf16.msra.mxu0 %v1089
  %1109 = vmatprep.subr.bf16.mxu0 %v1088
  %1110 = vmatpush1.bf16.msra.mxu0 %v1087
  %1111 = vmatprep.subr.bf16.mxu0 %v1086
  %1112 = vmatpush1.bf16.msra.mxu0 %v1085
  %1113 = vmatprep.subr.bf16.mxu0 %v1084
  %1114 = vmatpush1.bf16.msra.mxu0 %v1083
  %1115 = vmatprep.subr.bf16.mxu0 %v1082
  %1116 = vmatpush1.bf16.msra.mxu0 %v1081
  %1117 = vmatprep.subr.bf16.mxu0 %v1080
  %1118 = vmatpush1.bf16.msra.mxu0 %v1079
  %1119 = vmatprep.subr.bf16.mxu0 %v1078
  %1120 = vmatpush1.bf16.msra.mxu0 %v1077
  %1121 = vmatprep.subr.bf16.mxu0 %v1076
  %1122 = vmatpush1.bf16.msra.mxu0 %v1075
  %1123 = vmatprep.subr.bf16.mxu0 0
  %1124 = vmatpush2.bf16.msra.mxu0 0
  %1125 = vmatprep.subr.bf16.mxu0 0
  %1126 = vmatpush2.bf16.msra.mxu0 0
  %1127 = vmatprep.subr.bf16.mxu0 0
  %1128 = vmatpush2.bf16.msra.mxu0 0
  %1129 = vmatprep.subr.bf16.mxu0 0
  %1130 = vmatpush2.bf16.msra.mxu0 0
  %1131 = vmatprep.subr.bf16.mxu0 0
  %1132 = vmatpush2.bf16.msra.mxu0 0
  %1133 = vmatprep.subr.bf16.mxu0 0
  %1134 = vmatpush2.bf16.msra.mxu0 0
  %1135 = vmatprep.subr.bf16.mxu0 0
  %1136 = vmatpush2.bf16.msra.mxu0 0
  %1137 = vmatprep.subr.bf16.mxu0 0
  %1138 = vmatpush2.bf16.msra.mxu0 0
  %1139 = vmatprep.mubr.bf16.mxu0 0
  %1140 = vmatmul.mubr.bf16.gmra.mxu0 %v997
  %v1141 = vpop.f32.mrf.mxu0
  %v1142 = vadd.f32 %v1020, %v1141
  %v1143 = vpop.f32.mrf.mxu0
  %v1144 = vadd.f32 %v1024, %v1143
  %v1145 = vpop.f32.mrf.mxu0
  %v1146 = vadd.f32 %v1020, %v1145
  %v1147 = vpop.f32.mrf.mxu0
  %v1148 = vadd.f32 %v1024, %v1147
  %1149 = vmatprep.mubr.bf16.mxu0 0
  %1150 = vmatmul.mubr.bf16.gmra.mxu0 %v998
  %v1151 = vpop.f32.mrf.mxu0
  %v1152 = vadd.f32 %v1020, %v1151
  %v1153 = vpop.f32.mrf.mxu0
  %v1154 = vadd.f32 %v1024, %v1153
  %v1155 = vpop.f32.mrf.mxu0
  %v1156 = vadd.f32 %v1020, %v1155
  %v1157 = vpop.f32.mrf.mxu0
  %v1158 = vadd.f32 %v1024, %v1157
  %1159 = vdwg.mxu0
  %v1160 = vmax.f32 %v1142, 0.0
  %v1161 = vmax.f32 %v1146, 0.0
  %v1162 = vmax.f32 %v1152, 0.0
  %v1163 = vmax.f32 %v1156, 0.0
  %v1164 = vxor.u32 %v1144, 2147483648
  %v1165 = vxor.u32 %v1148, 2147483648
  %v1166 = vxor.u32 %v1154, 2147483648
  %v1167 = vxor.u32 %v1158, 2147483648
  %v1168 = vmul.f32 %v1164, 1.442695
  %v1169 = vpow.pop %v1168
  %v1170 = vmul.f32 %v1165, 1.442695
  %v1171 = vpow.pop %v1170
  %v1172 = vmul.f32 %v1166, 1.442695
  %v1173 = vpow.pop %v1172
  %v1174 = vmul.f32 %v1167, 1.442695
  %v1175 = vpow.pop %v1174
  %v1176 = vadd.f32 %v1169, 1.0
  %v1177 = vadd.f32 %v1171, 1.0
  %v1178 = vadd.f32 %v1173, 1.0
  %v1179 = vadd.f32 %v1175, 1.0
  %v1180 = vrcp.pop %v1176
  %v1181 = vmul.f32 1.0, %v1180
  %v1182 = vrcp.pop %v1177
  %v1183 = vmul.f32 1.0, %v1182
  %v1184 = vrcp.pop %v1178
  %v1185 = vmul.f32 1.0, %v1184
  %v1186 = vrcp.pop %v1179
  %v1187 = vmul.f32 1.0, %v1186
  %v1188 = vmul.f32 %v1181, %v993
  %v1189 = vmul.f32 %v1183, %v994
  %v1190 = vmul.f32 %v1185, %v995
  %v1191 = vmul.f32 %v1187, %v996
  %v1192 = vsub.f32 1.0, %v1181
  %v1193 = vsub.f32 1.0, %v1183
  %v1194 = vsub.f32 1.0, %v1185
  %v1195 = vsub.f32 1.0, %v1187
  %v1196 = vmul.f32 %v1192, %v1160
  %v1197 = vmul.f32 %v1193, %v1161
  %v1198 = vmul.f32 %v1194, %v1162
  %v1199 = vmul.f32 %v1195, %v1163
  %v1200 = vadd.f32 %v1188, %v1196
  %v1201 = vadd.f32 %v1189, %v1197
  %v1202 = vadd.f32 %v1190, %v1198
  %v1203 = vadd.f32 %v1191, %v1199
  %v1204 = vpack.c.bf16 %v1201, %v1200
  %v1205 = vpack.c.bf16 %v1203, %v1202
  %s1206 = scalar_lea.vmem %s3, 128
  %v1207 = vld [vmem:[%s1206] sm:$0xff]
  %v1208 = vld [vmem:[%s1206 + $0x8] sm:$0xff]
  %v1209 = vld [vmem:[%s1206 + $0x10] sm:$0xff]
  %v1210 = vld [vmem:[%s1206 + $0x18] sm:$0xff]
  %v1211 = vld [vmem:[%s1206 + $0x20] sm:$0xff]
  %v1212 = vld [vmem:[%s1206 + $0x28] sm:$0xff]
  %v1213 = vld [vmem:[%s1206 + $0x30] sm:$0xff]
  %v1214 = vld [vmem:[%s1206 + $0x38] sm:$0xff]
  %v1215 = vld [vmem:[%s1206 + $0x40] sm:$0xff]
  %v1216 = vld [vmem:[%s1206 + $0x48] sm:$0xff]
  %v1217 = vld [vmem:[%s1206 + $0x50] sm:$0xff]
  %v1218 = vld [vmem:[%s1206 + $0x58] sm:$0xff]
  %v1219 = vld [vmem:[%s1206 + $0x60] sm:$0xff]
  %v1220 = vld [vmem:[%s1206 + $0x68] sm:$0xff]
  %v1221 = vld [vmem:[%s1206 + $0x70] sm:$0xff]
  %v1222 = vld [vmem:[%s1206 + $0x78] sm:$0xff]
  %s1223 = scalar_lea.vmem %s4, 2
  %v1224 = vld [vmem:[%s1223] sm:$0x3]
  %v1226 = vlaneseq
  %v1227 = vshrl.u32 %v1226, 7
  %v1228 = vsub.s32 0, %v1227
  %v1229 = vrot.slane %v1224, %v1228
  %v1230 = vlaneseq
  %v1231 = vshrl.u32 %v1230, 7
  %v1232 = vsub.s32 1, %v1231
  %v1233 = vrot.slane %v1224, %v1232
  %v1252 = vunpack.c.l.b16 %v1207
  %v1253 = vunpack.c.h.b16 %v1207
  %v1254 = vunpack.c.l.b16 %v1208
  %v1255 = vunpack.c.h.b16 %v1208
  %v1256 = vunpack.c.l.b16 %v1209
  %v1257 = vunpack.c.h.b16 %v1209
  %v1258 = vunpack.c.l.b16 %v1210
  %v1259 = vunpack.c.h.b16 %v1210
  %v1260 = vunpack.c.l.b16 %v1211
  %v1261 = vunpack.c.h.b16 %v1211
  %v1262 = vunpack.c.l.b16 %v1212
  %v1263 = vunpack.c.h.b16 %v1212
  %v1264 = vunpack.c.l.b16 %v1213
  %v1265 = vunpack.c.h.b16 %v1213
  %v1266 = vunpack.c.l.b16 %v1214
  %v1267 = vunpack.c.h.b16 %v1214
  %v1268 = vunpack.c.l.b16 %v1215
  %v1269 = vunpack.c.h.b16 %v1215
  %v1270 = vunpack.c.l.b16 %v1216
  %v1271 = vunpack.c.h.b16 %v1216
  %v1272 = vunpack.c.l.b16 %v1217
  %v1273 = vunpack.c.h.b16 %v1217
  %v1274 = vunpack.c.l.b16 %v1218
  %v1275 = vunpack.c.h.b16 %v1218
  %v1276 = vunpack.c.l.b16 %v1219
  %v1277 = vunpack.c.h.b16 %v1219
  %v1278 = vunpack.c.l.b16 %v1220
  %v1279 = vunpack.c.h.b16 %v1220
  %v1280 = vunpack.c.l.b16 %v1221
  %v1281 = vunpack.c.h.b16 %v1221
  %v1282 = vunpack.c.l.b16 %v1222
  %v1283 = vunpack.c.h.b16 %v1222
  %v1284 = vpack.c.b16 %v1254, %v1252
  %v1285 = vpack.c.b16 %v1255, %v1253
  %v1286 = vpack.c.b16 %v1258, %v1256
  %v1287 = vpack.c.b16 %v1259, %v1257
  %v1288 = vpack.c.b16 %v1262, %v1260
  %v1289 = vpack.c.b16 %v1263, %v1261
  %v1290 = vpack.c.b16 %v1266, %v1264
  %v1291 = vpack.c.b16 %v1267, %v1265
  %v1292 = vpack.c.b16 %v1270, %v1268
  %v1293 = vpack.c.b16 %v1271, %v1269
  %v1294 = vpack.c.b16 %v1274, %v1272
  %v1295 = vpack.c.b16 %v1275, %v1273
  %v1296 = vpack.c.b16 %v1278, %v1276
  %v1297 = vpack.c.b16 %v1279, %v1277
  %v1298 = vpack.c.b16 %v1282, %v1280
  %v1299 = vpack.c.b16 %v1283, %v1281
  %1316 = vmatprep.subr.bf16.mxu0 %v1299
  %1317 = vmatpush1.bf16.msra.mxu0 %v1298
  %1318 = vmatprep.subr.bf16.mxu0 %v1297
  %1319 = vmatpush1.bf16.msra.mxu0 %v1296
  %1320 = vmatprep.subr.bf16.mxu0 %v1295
  %1321 = vmatpush1.bf16.msra.mxu0 %v1294
  %1322 = vmatprep.subr.bf16.mxu0 %v1293
  %1323 = vmatpush1.bf16.msra.mxu0 %v1292
  %1324 = vmatprep.subr.bf16.mxu0 %v1291
  %1325 = vmatpush1.bf16.msra.mxu0 %v1290
  %1326 = vmatprep.subr.bf16.mxu0 %v1289
  %1327 = vmatpush1.bf16.msra.mxu0 %v1288
  %1328 = vmatprep.subr.bf16.mxu0 %v1287
  %1329 = vmatpush1.bf16.msra.mxu0 %v1286
  %1330 = vmatprep.subr.bf16.mxu0 %v1285
  %1331 = vmatpush1.bf16.msra.mxu0 %v1284
  %1332 = vmatprep.subr.bf16.mxu0 0
  %1333 = vmatpush2.bf16.msra.mxu0 0
  %1334 = vmatprep.subr.bf16.mxu0 0
  %1335 = vmatpush2.bf16.msra.mxu0 0
  %1336 = vmatprep.subr.bf16.mxu0 0
  %1337 = vmatpush2.bf16.msra.mxu0 0
  %1338 = vmatprep.subr.bf16.mxu0 0
  %1339 = vmatpush2.bf16.msra.mxu0 0
  %1340 = vmatprep.subr.bf16.mxu0 0
  %1341 = vmatpush2.bf16.msra.mxu0 0
  %1342 = vmatprep.subr.bf16.mxu0 0
  %1343 = vmatpush2.bf16.msra.mxu0 0
  %1344 = vmatprep.subr.bf16.mxu0 0
  %1345 = vmatpush2.bf16.msra.mxu0 0
  %1346 = vmatprep.subr.bf16.mxu0 0
  %1347 = vmatpush2.bf16.msra.mxu0 0
  %1348 = vmatprep.mubr.bf16.mxu0 0
  %1349 = vmatmul.mubr.bf16.gmra.mxu0 %v1204
  %v1350 = vpop.f32.mrf.mxu0
  %v1351 = vadd.f32 %v1229, %v1350
  %v1352 = vpop.f32.mrf.mxu0
  %v1353 = vadd.f32 %v1233, %v1352
  %v1354 = vpop.f32.mrf.mxu0
  %v1355 = vadd.f32 %v1229, %v1354
  %v1356 = vpop.f32.mrf.mxu0
  %v1357 = vadd.f32 %v1233, %v1356
  %1358 = vmatprep.mubr.bf16.mxu0 0
  %1359 = vmatmul.mubr.bf16.gmra.mxu0 %v1205
  %v1360 = vpop.f32.mrf.mxu0
  %v1361 = vadd.f32 %v1229, %v1360
  %v1362 = vpop.f32.mrf.mxu0
  %v1363 = vadd.f32 %v1233, %v1362
  %v1364 = vpop.f32.mrf.mxu0
  %v1365 = vadd.f32 %v1229, %v1364
  %v1366 = vpop.f32.mrf.mxu0
  %v1367 = vadd.f32 %v1233, %v1366
  %1368 = vdwg.mxu0
  %v1369 = vmax.f32 %v1351, 0.0
  %v1370 = vmax.f32 %v1355, 0.0
  %v1371 = vmax.f32 %v1361, 0.0
  %v1372 = vmax.f32 %v1365, 0.0
  %v1373 = vxor.u32 %v1353, 2147483648
  %v1374 = vxor.u32 %v1357, 2147483648
  %v1375 = vxor.u32 %v1363, 2147483648
  %v1376 = vxor.u32 %v1367, 2147483648
  %v1377 = vmul.f32 %v1373, 1.442695
  %v1378 = vpow.pop %v1377
  %v1379 = vmul.f32 %v1374, 1.442695
  %v1380 = vpow.pop %v1379
  %v1381 = vmul.f32 %v1375, 1.442695
  %v1382 = vpow.pop %v1381
  %v1383 = vmul.f32 %v1376, 1.442695
  %v1384 = vpow.pop %v1383
  %v1385 = vadd.f32 %v1378, 1.0
  %v1386 = vadd.f32 %v1380, 1.0
  %v1387 = vadd.f32 %v1382, 1.0
  %v1388 = vadd.f32 %v1384, 1.0
  %v1389 = vrcp.pop %v1385
  %v1390 = vmul.f32 1.0, %v1389
  %v1391 = vrcp.pop %v1386
  %v1392 = vmul.f32 1.0, %v1391
  %v1393 = vrcp.pop %v1387
  %v1394 = vmul.f32 1.0, %v1393
  %v1395 = vrcp.pop %v1388
  %v1396 = vmul.f32 1.0, %v1395
  %v1397 = vmul.f32 %v1390, %v1200
  %v1398 = vmul.f32 %v1392, %v1201
  %v1399 = vmul.f32 %v1394, %v1202
  %v1400 = vmul.f32 %v1396, %v1203
  %v1401 = vsub.f32 1.0, %v1390
  %v1402 = vsub.f32 1.0, %v1392
  %v1403 = vsub.f32 1.0, %v1394
  %v1404 = vsub.f32 1.0, %v1396
  %v1405 = vmul.f32 %v1401, %v1369
  %v1406 = vmul.f32 %v1402, %v1370
  %v1407 = vmul.f32 %v1403, %v1371
  %v1408 = vmul.f32 %v1404, %v1372
  %v1409 = vadd.f32 %v1397, %v1405
  %v1410 = vadd.f32 %v1398, %v1406
  %v1411 = vadd.f32 %v1399, %v1407
  %v1412 = vadd.f32 %v1400, %v1408
  %v1413 = vpack.c.bf16 %v1409, %v1409
  %v1414 = vpack.c.bf16 %v1410, %v1410
  %v1415 = vpack.c.bf16 %v1411, %v1411
  %v1416 = vpack.c.bf16 %v1412, %v1412
  %v1417 = vld [vmem:[%s5] sm:$0xf]
  %v1418 = vld [vmem:[%s5 + $0x4] sm:$0xf]
  %v1419 = vld [vmem:[%s5 + $0x8] sm:$0xf]
  %v1420 = vld [vmem:[%s5 + $0xc] sm:$0xf]
  %v1421 = vld [vmem:[%s5 + $0x10] sm:$0xf]
  %v1422 = vld [vmem:[%s5 + $0x14] sm:$0xf]
  %v1423 = vld [vmem:[%s5 + $0x18] sm:$0xf]
  %v1424 = vld [vmem:[%s5 + $0x1c] sm:$0xf]
  %v1425 = vld [vmem:[%s5 + $0x20] sm:$0xf]
  %v1426 = vld [vmem:[%s5 + $0x24] sm:$0xf]
  %v1427 = vld [vmem:[%s5 + $0x28] sm:$0xf]
  %v1428 = vld [vmem:[%s5 + $0x2c] sm:$0xf]
  %v1429 = vld [vmem:[%s5 + $0x30] sm:$0xf]
  %v1430 = vld [vmem:[%s5 + $0x34] sm:$0xf]
  %v1431 = vld [vmem:[%s5 + $0x38] sm:$0xf]
  %v1432 = vld [vmem:[%s5 + $0x3c] sm:$0xf]
  %v1433 = vld [vmem:[%s5 + $0x40] sm:$0xf]
  %v1434 = vld [vmem:[%s5 + $0x44] sm:$0xf]
  %v1435 = vld [vmem:[%s5 + $0x48] sm:$0xf]
  %v1436 = vld [vmem:[%s5 + $0x4c] sm:$0xf]
  %v1437 = vld [vmem:[%s5 + $0x50] sm:$0xf]
  %v1438 = vld [vmem:[%s5 + $0x54] sm:$0xf]
  %v1439 = vld [vmem:[%s5 + $0x58] sm:$0xf]
  %v1440 = vld [vmem:[%s5 + $0x5c] sm:$0xf]
  %v1441 = vld [vmem:[%s5 + $0x60] sm:$0xf]
  %v1442 = vld [vmem:[%s5 + $0x64] sm:$0xf]
  %v1443 = vld [vmem:[%s5 + $0x68] sm:$0xf]
  %v1444 = vld [vmem:[%s5 + $0x6c] sm:$0xf]
  %v1445 = vld [vmem:[%s5 + $0x70] sm:$0xf]
  %v1446 = vld [vmem:[%s5 + $0x74] sm:$0xf]
  %v1447 = vld [vmem:[%s5 + $0x78] sm:$0xf]
  %v1448 = vld [vmem:[%s5 + $0x7c] sm:$0xf]
  %v1449 = vld [vmem:[%s5 + $0x80] sm:$0xf]
  %v1450 = vld [vmem:[%s5 + $0x84] sm:$0xf]
  %v1451 = vld [vmem:[%s5 + $0x88] sm:$0xf]
  %v1452 = vld [vmem:[%s5 + $0x8c] sm:$0xf]
  %v1453 = vld [vmem:[%s5 + $0x90] sm:$0xf]
  %v1454 = vld [vmem:[%s5 + $0x94] sm:$0xf]
  %v1455 = vld [vmem:[%s5 + $0x98] sm:$0xf]
  %v1456 = vld [vmem:[%s5 + $0x9c] sm:$0xf]
  %v1457 = vld [vmem:[%s5 + $0xa0] sm:$0xf]
  %v1458 = vld [vmem:[%s5 + $0xa4] sm:$0xf]
  %v1459 = vld [vmem:[%s5 + $0xa8] sm:$0xf]
  %v1460 = vld [vmem:[%s5 + $0xac] sm:$0xf]
  %v1461 = vld [vmem:[%s5 + $0xb0] sm:$0xf]
  %v1462 = vld [vmem:[%s5 + $0xb4] sm:$0xf]
  %v1463 = vld [vmem:[%s5 + $0xb8] sm:$0xf]
  %v1464 = vld [vmem:[%s5 + $0xbc] sm:$0xf]
  %v1465 = vld [vmem:[%s5 + $0xc0] sm:$0xf]
  %v1466 = vld [vmem:[%s5 + $0xc4] sm:$0xf]
  %v1467 = vld [vmem:[%s5 + $0xc8] sm:$0xf]
  %v1468 = vld [vmem:[%s5 + $0xcc] sm:$0xf]
  %v1469 = vld [vmem:[%s5 + $0xd0] sm:$0xf]
  %v1470 = vld [vmem:[%s5 + $0xd4] sm:$0xf]
  %v1471 = vld [vmem:[%s5 + $0xd8] sm:$0xf]
  %v1472 = vld [vmem:[%s5 + $0xdc] sm:$0xf]
  %v1473 = vld [vmem:[%s5 + $0xe0] sm:$0xf]
  %v1474 = vld [vmem:[%s5 + $0xe4] sm:$0xf]
  %v1475 = vld [vmem:[%s5 + $0xe8] sm:$0xf]
  %v1476 = vld [vmem:[%s5 + $0xec] sm:$0xf]
  %v1477 = vld [vmem:[%s5 + $0xf0] sm:$0xf]
  %v1478 = vld [vmem:[%s5 + $0xf4] sm:$0xf]
  %v1479 = vld [vmem:[%s5 + $0xf8] sm:$0xf]
  %v1480 = vld [vmem:[%s5 + $0xfc] sm:$0xf]
  %v1481 = vld [vmem:[%s6] sm:$0x1]
  %v1483 = vlaneseq
  %v1484 = vshrl.u32 %v1483, 7
  %v1485 = vsub.s32 0, %v1484
  %v1486 = vrot.slane %v1481, %v1485
  %v1552 = vunpack.c.l.b16 %v1417
  %v1553 = vunpack.c.l.b16 %v1418
  %v1554 = vunpack.c.l.b16 %v1419
  %v1555 = vunpack.c.l.b16 %v1420
  %v1556 = vunpack.c.l.b16 %v1421
  %v1557 = vunpack.c.l.b16 %v1422
  %v1558 = vunpack.c.l.b16 %v1423
  %v1559 = vunpack.c.l.b16 %v1424
  %v1560 = vunpack.c.l.b16 %v1425
  %v1561 = vunpack.c.l.b16 %v1426
  %v1562 = vunpack.c.l.b16 %v1427
  %v1563 = vunpack.c.l.b16 %v1428
  %v1564 = vunpack.c.l.b16 %v1429
  %v1565 = vunpack.c.l.b16 %v1430
  %v1566 = vunpack.c.l.b16 %v1431
  %v1567 = vunpack.c.l.b16 %v1432
  %v1568 = vunpack.c.l.b16 %v1433
  %v1569 = vunpack.c.l.b16 %v1434
  %v1570 = vunpack.c.l.b16 %v1435
  %v1571 = vunpack.c.l.b16 %v1436
  %v1572 = vunpack.c.l.b16 %v1437
  %v1573 = vunpack.c.l.b16 %v1438
  %v1574 = vunpack.c.l.b16 %v1439
  %v1575 = vunpack.c.l.b16 %v1440
  %v1576 = vunpack.c.l.b16 %v1441
  %v1577 = vunpack.c.l.b16 %v1442
  %v1578 = vunpack.c.l.b16 %v1443
  %v1579 = vunpack.c.l.b16 %v1444
  %v1580 = vunpack.c.l.b16 %v1445
  %v1581 = vunpack.c.l.b16 %v1446
  %v1582 = vunpack.c.l.b16 %v1447
  %v1583 = vunpack.c.l.b16 %v1448
  %v1584 = vunpack.c.l.b16 %v1449
  %v1585 = vunpack.c.l.b16 %v1450
  %v1586 = vunpack.c.l.b16 %v1451
  %v1587 = vunpack.c.l.b16 %v1452
  %v1588 = vunpack.c.l.b16 %v1453
  %v1589 = vunpack.c.l.b16 %v1454
  %v1590 = vunpack.c.l.b16 %v1455
  %v1591 = vunpack.c.l.b16 %v1456
  %v1592 = vunpack.c.l.b16 %v1457
  %v1593 = vunpack.c.l.b16 %v1458
  %v1594 = vunpack.c.l.b16 %v1459
  %v1595 = vunpack.c.l.b16 %v1460
  %v1596 = vunpack.c.l.b16 %v1461
  %v1597 = vunpack.c.l.b16 %v1462
  %v1598 = vunpack.c.l.b16 %v1463
  %v1599 = vunpack.c.l.b16 %v1464
  %v1600 = vunpack.c.l.b16 %v1465
  %v1601 = vunpack.c.l.b16 %v1466
  %v1602 = vunpack.c.l.b16 %v1467
  %v1603 = vunpack.c.l.b16 %v1468
  %v1604 = vunpack.c.l.b16 %v1469
  %v1605 = vunpack.c.l.b16 %v1470
  %v1606 = vunpack.c.l.b16 %v1471
  %v1607 = vunpack.c.l.b16 %v1472
  %v1608 = vunpack.c.l.b16 %v1473
  %v1609 = vunpack.c.l.b16 %v1474
  %v1610 = vunpack.c.l.b16 %v1475
  %v1611 = vunpack.c.l.b16 %v1476
  %v1612 = vunpack.c.l.b16 %v1477
  %v1613 = vunpack.c.l.b16 %v1478
  %v1614 = vunpack.c.l.b16 %v1479
  %v1615 = vunpack.c.l.b16 %v1480
  %v1616 = vpack.c.b16 %v1553, %v1552
  %v1617 = vpack.c.b16 %v1555, %v1554
  %v1618 = vpack.c.b16 %v1557, %v1556
  %v1619 = vpack.c.b16 %v1559, %v1558
  %v1620 = vpack.c.b16 %v1561, %v1560
  %v1621 = vpack.c.b16 %v1563, %v1562
  %v1622 = vpack.c.b16 %v1565, %v1564
  %v1623 = vpack.c.b16 %v1567, %v1566
  %v1624 = vpack.c.b16 %v1569, %v1568
  %v1625 = vpack.c.b16 %v1571, %v1570
  %v1626 = vpack.c.b16 %v1573, %v1572
  %v1627 = vpack.c.b16 %v1575, %v1574
  %v1628 = vpack.c.b16 %v1577, %v1576
  %v1629 = vpack.c.b16 %v1579, %v1578
  %v1630 = vpack.c.b16 %v1581, %v1580
  %v1631 = vpack.c.b16 %v1583, %v1582
  %v1632 = vpack.c.b16 %v1585, %v1584
  %v1633 = vpack.c.b16 %v1587, %v1586
  %v1634 = vpack.c.b16 %v1589, %v1588
  %v1635 = vpack.c.b16 %v1591, %v1590
  %v1636 = vpack.c.b16 %v1593, %v1592
  %v1637 = vpack.c.b16 %v1595, %v1594
  %v1638 = vpack.c.b16 %v1597, %v1596
  %v1639 = vpack.c.b16 %v1599, %v1598
  %v1640 = vpack.c.b16 %v1601, %v1600
  %v1641 = vpack.c.b16 %v1603, %v1602
  %v1642 = vpack.c.b16 %v1605, %v1604
  %v1643 = vpack.c.b16 %v1607, %v1606
  %v1644 = vpack.c.b16 %v1609, %v1608
  %v1645 = vpack.c.b16 %v1611, %v1610
  %v1646 = vpack.c.b16 %v1613, %v1612
  %v1647 = vpack.c.b16 %v1615, %v1614
  %1680 = vmatprep.subr.bf16.mxu0 0
  %1681 = vmatpush1.bf16.msra.mxu0 %v1623
  %1682 = vmatprep.subr.bf16.mxu0 0
  %1683 = vmatpush1.bf16.msra.mxu0 %v1622
  %1684 = vmatprep.subr.bf16.mxu0 0
  %1685 = vmatpush1.bf16.msra.mxu0 %v1621
  %1686 = vmatprep.subr.bf16.mxu0 0
  %1687 = vmatpush1.bf16.msra.mxu0 %v1620
  %1688 = vmatprep.subr.bf16.mxu0 0
  %1689 = vmatpush1.bf16.msra.mxu0 %v1619
  %1690 = vmatprep.subr.bf16.mxu0 0
  %1691 = vmatpush1.bf16.msra.mxu0 %v1618
  %1692 = vmatprep.subr.bf16.mxu0 0
  %1693 = vmatpush1.bf16.msra.mxu0 %v1617
  %1694 = vmatprep.subr.bf16.mxu0 0
  %1695 = vmatpush1.bf16.msra.mxu0 %v1616
  %1696 = vmatprep.subr.bf16.mxu0 0
  %1697 = vmatpush2.bf16.msra.mxu0 %v1631
  %1698 = vmatprep.subr.bf16.mxu0 0
  %1699 = vmatpush2.bf16.msra.mxu0 %v1630
  %1700 = vmatprep.subr.bf16.mxu0 0
  %1701 = vmatpush2.bf16.msra.mxu0 %v1629
  %1702 = vmatprep.subr.bf16.mxu0 0
  %1703 = vmatpush2.bf16.msra.mxu0 %v1628
  %1704 = vmatprep.subr.bf16.mxu0 0
  %1705 = vmatpush2.bf16.msra.mxu0 %v1627
  %1706 = vmatprep.subr.bf16.mxu0 0
  %1707 = vmatpush2.bf16.msra.mxu0 %v1626
  %1708 = vmatprep.subr.bf16.mxu0 0
  %1709 = vmatpush2.bf16.msra.mxu0 %v1625
  %1710 = vmatprep.subr.bf16.mxu0 0
  %1711 = vmatpush2.bf16.msra.mxu0 %v1624
  %1712 = vmatprep.mubr.bf16.mxu0 %v1414
  %1713 = vmatmul.mubr.bf16.gmra.mxu0 %v1413
  %v1714 = vpop.f32.mrf.mxu0
  %v1715 = vadd.f32 %v1486, %v1714
  %v1716 = vpop.f32.mrf.mxu0
  %v1717 = vpop.f32.mrf.mxu0
  %v1718 = vpop.f32.mrf.mxu0
  %1719 = vdwg.mxu0
  %1720 = vmatprep.subr.bf16.mxu0 0
  %1721 = vmatpush1.bf16.msra.mxu0 %v1639
  %1722 = vmatprep.subr.bf16.mxu0 0
  %1723 = vmatpush1.bf16.msra.mxu0 %v1638
  %1724 = vmatprep.subr.bf16.mxu0 0
  %1725 = vmatpush1.bf16.msra.mxu0 %v1637
  %1726 = vmatprep.subr.bf16.mxu0 0
  %1727 = vmatpush1.bf16.msra.mxu0 %v1636
  %1728 = vmatprep.subr.bf16.mxu0 0
  %1729 = vmatpush1.bf16.msra.mxu0 %v1635
  %1730 = vmatprep.subr.bf16.mxu0 0
  %1731 = vmatpush1.bf16.msra.mxu0 %v1634
  %1732 = vmatprep.subr.bf16.mxu0 0
  %1733 = vmatpush1.bf16.msra.mxu0 %v1633
  %1734 = vmatprep.subr.bf16.mxu0 0
  %1735 = vmatpush1.bf16.msra.mxu0 %v1632
  %1736 = vmatprep.subr.bf16.mxu0 0
  %1737 = vmatpush2.bf16.msra.mxu0 %v1647
  %1738 = vmatprep.subr.bf16.mxu0 0
  %1739 = vmatpush2.bf16.msra.mxu0 %v1646
  %1740 = vmatprep.subr.bf16.mxu0 0
  %1741 = vmatpush2.bf16.msra.mxu0 %v1645
  %1742 = vmatprep.subr.bf16.mxu0 0
  %1743 = vmatpush2.bf16.msra.mxu0 %v1644
  %1744 = vmatprep.subr.bf16.mxu0 0
  %1745 = vmatpush2.bf16.msra.mxu0 %v1643
  %1746 = vmatprep.subr.bf16.mxu0 0
  %1747 = vmatpush2.bf16.msra.mxu0 %v1642
  %1748 = vmatprep.subr.bf16.mxu0 0
  %1749 = vmatpush2.bf16.msra.mxu0 %v1641
  %1750 = vmatprep.subr.bf16.mxu0 0
  %1751 = vmatpush2.bf16.msra.mxu0 %v1640
  %1752 = vmatprep.mubr.bf16.mxu0 %v1416
  %1753 = vmatmul.mubr.bf16.gmra.mxu0 %v1415
  %v1754 = vpop.f32.mrf.mxu0
  %v1755 = vadd.f32 %v1715, %v1754
  %v1756 = vpop.f32.mrf.mxu0
  %v1757 = vpop.f32.mrf.mxu0
  %v1758 = vpop.f32.mrf.mxu0
  %1759 = vdwg.mxu0
  %1760 = vst [vmem:[%s7] sm:$0xff] %v1755
  // Predicated region
  $region30: #{elmo_character_encoder_forward.1} parent=0 // pred_check
    _
  $region31: #{elmo_character_encoder_forward.1} parent=0 // pred_check_branch
    %1762 = sbr.rel (0) target = $region33
  $region32: #{elmo_character_encoder_forward.1} parent=0 // pred_region
    _
  $region33: #{elmo_character_encoder_forward.1} parent=0 // pred_fallthru
    _
  // Predicated region
  $region34: #{elmo_character_encoder_forward.1} parent=0 // pred_check
    _
  $region35: #{elmo_character_encoder_forward.1} parent=0 // pred_check_branch
    %1764 = sbr.rel (0) target = $region37
  $region36: #{elmo_character_encoder_forward.1} parent=0 // pred_region
    _
  $region37: #{elmo_character_encoder_forward.1} parent=0 // pred_fallthru
    _

</llo_original>
